<compile_context>
chip_gen: v7x
topology: tpu7x:2x2x1
jax: 0.10.0
libtpu: 0.0.40
codegen_flags: <defaults>
</compile_context>

<pallas_src>
import functools

import jax
import jax.numpy as jnp
import numpy as np
from jax.experimental import pallas as pl
from jax.experimental.pallas import tpu as pltpu


# ----------------------------- fused Pallas kernel --------------------------

def _vgae_fused_kernel(x_ref, e_ref, g_ref,
                       lin_w_ref, lin_b_ref, we_all_ref,
                       c1_wi_ref, c1_wj_ref, c1_b_ref,
                       o_wi_ref, o_wj_ref, o_b_ref,
                       out_ref, *, channels, num_edges):
    C = channels
    E = num_edges
    f32 = jnp.float32

    # ---- layer 0: Linear (weights pre-transposed in the wrapper) ----
    h0 = (jnp.dot(x_ref[...], lin_w_ref[...], preferred_element_type=f32)
          + lin_b_ref[...])                                        # (N, C)

    # stacked one-hot gather matrix [dst ; src] arrives as bf16 (exact 0/1);
    # upcast once so everything downstream is exact fp32.
    g = g_ref[...].astype(f32)                                     # (2E, N)
    scat = g[:E].T                                                 # (N, E) scatter matrix, built once, reused

    # edge-feature contribution of all 6 message branches of all 3 convs:
    # h-independent -> one wide MXU matmul hoisted above both conv layers.
    ze_all = jnp.dot(e_ref[...], we_all_ref[...],
                     preferred_element_type=f32)                   # (E, 6C)
    ze1 = ze_all[:, :2 * C]                                        # conv1      [f | s]
    ze2 = ze_all[:, 2 * C:]                                        # mu/logstd  [mu_f | ls_f | mu_s | ls_s]

    def cgconv_aggr(h, wi, wj, ze, b, n_branch):
        # gather target AND source node features with one MXU matmul
        x_ij = jnp.dot(g, h, preferred_element_type=f32)           # (2E, C) = [x_i ; x_j]
        x_i = x_ij[:E]                                             # (E, C)  8-aligned sublane slice
        x_j = x_ij[E:]                                             # (E, C)
        # stacked message MLP: all branches (f/s [and mu/logstd]) in one pass
        z = (jnp.dot(x_i, wi, preferred_element_type=f32)
             + jnp.dot(x_j, wj, preferred_element_type=f32)
             + ze + b)                                             # (E, n_branch*C)
        half = (n_branch // 2) * C
        zf = z[:, :half]                                           # gate branch(es)
        zs = z[:, half:]                                           # softplus branch(es)
        gate = 1.0 / (1.0 + jnp.exp(-zf))                          # sigmoid (exact fp32)
        soft = jnp.maximum(zs, 0.0) + jnp.log1p(jnp.exp(-jnp.abs(zs)))  # stable softplus
        msg = gate * soft                                          # (E, half)
        # scatter-add over edges as a matmul (MXU), reusing the single transpose
        return jnp.dot(scat, msg, preferred_element_type=f32)      # (N, half)

    # ---- conv1 (+ residual, relu) ----
    a1 = cgconv_aggr(h0, c1_wi_ref[...], c1_wj_ref[...], ze1,
                     c1_b_ref[...], 2)                             # (N, C)
    h1 = jnp.maximum(h0 + a1, 0.0)                                 # (N, C)

    # ---- conv_mu and conv_logstd fused (shared gathers, stacked weights) ----
    a2 = cgconv_aggr(h1, o_wi_ref[...], o_wj_ref[...], ze2,
                     o_b_ref[...], 4)                              # (N, 2C) = [mu_aggr | logstd_aggr]

    out_ref[...] = jnp.concatenate([h1, h1], axis=-1) + a2         # (N, 2C) lane-denser slab


# ----------------------------- wrapper ---------------------------------------

def _vmem_specs(n):
    return [pl.BlockSpec(memory_space=pltpu.MemorySpace.VMEM) for _ in range(n)]


def _stack_cgconv_weights(branches, C):
    """branches: list of (w, b) with w (C, 2C+D), b (1, C), in the desired
    output-column order. Returns pre-transposed, pre-split, branch-stacked
    blocks: wi (C, k*C), wj (C, k*C), we (D, k*C), b (1, k*C)."""
    wi = jnp.concatenate([w[:, :C].T for w, _ in branches], axis=1)
    wj = jnp.concatenate([w[:, C:2 * C].T for w, _ in branches], axis=1)
    we = jnp.concatenate([w[:, 2 * C:].T for w, _ in branches], axis=1)
    b = jnp.concatenate([b for _, b in branches], axis=1)
    return wi, wj, we, b


def variational_gcn_encoder(params, x, edge_index, edge_attr):
    """Forward pass matching the PyTorch module. Returns (mu, logstd)."""
    N = x.shape[0]
    E = edge_index.shape[1]
    C = params["lin_w"].shape[0]
    src = edge_index[0]   # message source j
    dst = edge_index[1]   # message target i

    # stacked one-hot gather matrix [dst ; src] in bf16 (exact 0/1):
    # one operand, one gather matmul per conv layer, half the DMA bytes.
    g = jnp.concatenate([jax.nn.one_hot(dst, N, dtype=jnp.bfloat16),
                         jax.nn.one_hot(src, N, dtype=jnp.bfloat16)], axis=0)  # (2E, N)

    # wrapper-side weight layout plumbing (free): transpose / split / stack
    lin_wT = params["lin_w"].T                                          # (IN_C, C)
    c1_wi, c1_wj, c1_we, c1_b = _stack_cgconv_weights(
        [(params["c1_wf"], params["c1_bf"]),
         (params["c1_ws"], params["c1_bs"])], C)                        # f | s
    o_wi, o_wj, o_we, o_b = _stack_cgconv_weights(
        [(params["cm_wf"], params["cm_bf"]),
         (params["cl_wf"], params["cl_bf"]),
         (params["cm_ws"], params["cm_bs"]),
         (params["cl_ws"], params["cl_bs"])], C)                        # mu_f | ls_f | mu_s | ls_s
    we_all = jnp.concatenate([c1_we, o_we], axis=1)                     # (D, 6C): edge weights of ALL convs

    kernel = functools.partial(_vgae_fused_kernel, channels=C, num_edges=E)
    out = pl.pallas_call(
        kernel,
        out_shape=jax.ShapeDtypeStruct((N, 2 * C), jnp.float32),
        in_specs=_vmem_specs(12),
        out_specs=pl.BlockSpec(memory_space=pltpu.MemorySpace.VMEM),
        compiler_params=pltpu.CompilerParams(vmem_limit_bytes=32 * 1024 * 1024),
    )(x, edge_attr, g,
      lin_wT, params["lin_b"], we_all,
      c1_wi, c1_wj, c1_b,
      o_wi, o_wj, o_b)

    mu = out[:, :C]
    logstd = out[:, C:]
    return mu, logstd


# ------------------------- pure-JAX reference --------------------------------

def _ref_cgconv(x, edge_attr, src, dst, wf, bf, ws, bs, relu):
    x_i, x_j = x[dst], x[src]
    z = jnp.concatenate([x_i, x_j, edge_attr], axis=-1)
    gate = jax.nn.sigmoid(z @ wf.T + bf[0])
    soft = jax.nn.softplus(z @ ws.T + bs[0])
    msg = gate * soft
    aggr = jnp.zeros_like(x).at[dst].add(msg)
    out = x + aggr
    return jnp.maximum(out, 0.0) if relu else out


def _ref_forward(params, x, edge_index, edge_attr):
    src, dst = edge_index[0], edge_index[1]
    h = x @ params["lin_w"].T + params["lin_b"][0]
    h = _ref_cgconv(h, edge_attr, src, dst,
                    params["c1_wf"], params["c1_bf"], params["c1_ws"], params["c1_bs"], True)
    mu = _ref_cgconv(h, edge_attr, src, dst,
                     params["cm_wf"], params["cm_bf"], params["cm_ws"], params["cm_bs"], False)
    ls = _ref_cgconv(h, edge_attr, src, dst,
                     params["cl_wf"], params["cl_bf"], params["cl_ws"], params["cl_bs"], False)
    return mu, ls


# ----------------------------- main -------------------------------------------

if __name__ == "__main__":
    N = 16            # nodes
    E = 32            # edges
    IN_C = 8          # in_channels
    OUT_C = 16        # out_channels
    E_FEAT = 4        # edge feature dim

    key = jax.random.PRNGKey(0)
    ks = jax.random.split(key, 16)

    def w(k, shape, scale=0.1):
        return (scale * jax.random.normal(k, shape)).astype(jnp.float32)

    zdim = 2 * OUT_C + E_FEAT
    params = {
        "lin_w": w(ks[0], (OUT_C, IN_C)),
        "lin_b": w(ks[1], (1, OUT_C)),
        "c1_wf": w(ks[2], (OUT_C, zdim)), "c1_bf": w(ks[3], (1, OUT_C)),
        "c1_ws": w(ks[4], (OUT_C, zdim)), "c1_bs": w(ks[5], (1, OUT_C)),
        "cm_wf": w(ks[6], (OUT_C, zdim)), "cm_bf": w(ks[7], (1, OUT_C)),
        "cm_ws": w(ks[8], (OUT_C, zdim)), "cm_bs": w(ks[9], (1, OUT_C)),
        "cl_wf": w(ks[10], (OUT_C, zdim)), "cl_bf": w(ks[11], (1, OUT_C)),
        "cl_ws": w(ks[12], (OUT_C, zdim)), "cl_bs": w(ks[13], (1, OUT_C)),
    }

    x = jax.random.normal(ks[14], (N, IN_C), dtype=jnp.float32)
    edge_index = jax.random.randint(ks[15], (2, E), 0, N, dtype=jnp.int32)
    edge_attr = jax.random.normal(jax.random.PRNGKey(42), (E, E_FEAT), dtype=jnp.float32)

    mu, logstd = variational_gcn_encoder(params, x, edge_index, edge_attr)
    jax.block_until_ready((mu, logstd))

    mu_ref, logstd_ref = _ref_forward(params, x, edge_index, edge_attr)
    np.testing.assert_allclose(np.asarray(mu), np.asarray(mu_ref), rtol=1e-5, atol=1e-5)
    np.testing.assert_allclose(np.asarray(logstd), np.asarray(logstd_ref), rtol=1e-5, atol=1e-5)

    print("KERNEL_OK")
</pallas_src>

<mosaic_0001>
module attributes {stable_mosaic.version = 11 : i64} {
  func.func @_vgae_fused_kernel(%arg0: memref<16x8xf32, #tpu.memory_space<vmem>>, %arg1: memref<32x4xf32, #tpu.memory_space<vmem>>, %arg2: memref<64x16xbf16, #tpu.memory_space<vmem>>, %arg3: memref<8x16xf32, #tpu.memory_space<vmem>>, %arg4: memref<1x16xf32, #tpu.memory_space<vmem>>, %arg5: memref<4x96xf32, #tpu.memory_space<vmem>>, %arg6: memref<16x32xf32, #tpu.memory_space<vmem>>, %arg7: memref<16x32xf32, #tpu.memory_space<vmem>>, %arg8: memref<1x32xf32, #tpu.memory_space<vmem>>, %arg9: memref<16x64xf32, #tpu.memory_space<vmem>>, %arg10: memref<16x64xf32, #tpu.memory_space<vmem>>, %arg11: memref<1x64xf32, #tpu.memory_space<vmem>>, %arg12: memref<16x32xf32, #tpu.memory_space<vmem>>) attributes {dimension_semantics = [], scalar_prefetch = 0 : i64, scratch_operands = 0 : i64, tpu.core_type = #tpu.core_type<tc>} {
    %c0 = arith.constant 0 : index
    %c0_0 = arith.constant 0 : index
    %0 = vector.load %arg0[%c0, %c0_0] : memref<16x8xf32, #tpu.memory_space<vmem>>, vector<16x8xf32>
    %c0_1 = arith.constant 0 : index
    %c0_2 = arith.constant 0 : index
    %1 = vector.load %arg3[%c0_1, %c0_2] : memref<8x16xf32, #tpu.memory_space<vmem>>, vector<8x16xf32>
    %cst = arith.constant dense<0.000000e+00> : vector<16x16xf32>
    %2 = tpu.matmul %0, %1, %cst {dimension_numbers = #tpu.dot_dimension_numbers<[1], [0], [0], [1], [0, 0, 1, 1], [], []>} : vector<16x8xf32>, vector<8x16xf32>, vector<16x16xf32> -> vector<16x16xf32>
    %c0_3 = arith.constant 0 : index
    %c0_4 = arith.constant 0 : index
    %3 = vector.load %arg4[%c0_3, %c0_4] : memref<1x16xf32, #tpu.memory_space<vmem>>, vector<1x16xf32>
    %4 = vector.broadcast %3 : vector<1x16xf32> to vector<16x16xf32>
    %5 = arith.addf %2, %4 : vector<16x16xf32>
    %c0_5 = arith.constant 0 : index
    %c0_6 = arith.constant 0 : index
    %6 = vector.load %arg2[%c0_5, %c0_6] : memref<64x16xbf16, #tpu.memory_space<vmem>>, vector<64x16xbf16>
    %7 = arith.extf %6 : vector<64x16xbf16> to vector<64x16xf32>
    %8 = vector.extract_strided_slice %7 {offsets = [0, 0], sizes = [32, 16], strides = [1, 1]} : vector<64x16xf32> to vector<32x16xf32>
    %9 = tpu.transpose %8, [1, 0] : vector<32x16xf32> -> vector<16x32xf32>
    %c0_7 = arith.constant 0 : index
    %c0_8 = arith.constant 0 : index
    %10 = vector.load %arg1[%c0_7, %c0_8] : memref<32x4xf32, #tpu.memory_space<vmem>>, vector<32x4xf32>
    %c0_9 = arith.constant 0 : index
    %c0_10 = arith.constant 0 : index
    %11 = vector.load %arg5[%c0_9, %c0_10] : memref<4x96xf32, #tpu.memory_space<vmem>>, vector<4x96xf32>
    %cst_11 = arith.constant dense<0.000000e+00> : vector<32x96xf32>
    %12 = tpu.matmul %10, %11, %cst_11 {dimension_numbers = #tpu.dot_dimension_numbers<[1], [0], [0], [1], [0, 0, 1, 1], [], []>} : vector<32x4xf32>, vector<4x96xf32>, vector<32x96xf32> -> vector<32x96xf32>
    %13 = vector.extract_strided_slice %12 {offsets = [0, 0], sizes = [32, 32], strides = [1, 1]} : vector<32x96xf32> to vector<32x32xf32>
    %14 = vector.extract_strided_slice %12 {offsets = [0, 32], sizes = [32, 64], strides = [1, 1]} : vector<32x96xf32> to vector<32x64xf32>
    %c0_12 = arith.constant 0 : index
    %c0_13 = arith.constant 0 : index
    %15 = vector.load %arg6[%c0_12, %c0_13] : memref<16x32xf32, #tpu.memory_space<vmem>>, vector<16x32xf32>
    %c0_14 = arith.constant 0 : index
    %c0_15 = arith.constant 0 : index
    %16 = vector.load %arg7[%c0_14, %c0_15] : memref<16x32xf32, #tpu.memory_space<vmem>>, vector<16x32xf32>
    %c0_16 = arith.constant 0 : index
    %c0_17 = arith.constant 0 : index
    %17 = vector.load %arg8[%c0_16, %c0_17] : memref<1x32xf32, #tpu.memory_space<vmem>>, vector<1x32xf32>
    %cst_18 = arith.constant dense<0.000000e+00> : vector<64x16xf32>
    %18 = tpu.matmul %7, %5, %cst_18 {dimension_numbers = #tpu.dot_dimension_numbers<[1], [0], [0], [1], [0, 0, 1, 1], [], []>} : vector<64x16xf32>, vector<16x16xf32>, vector<64x16xf32> -> vector<64x16xf32>
    %19 = vector.extract_strided_slice %18 {offsets = [0, 0], sizes = [32, 16], strides = [1, 1]} : vector<64x16xf32> to vector<32x16xf32>
    %20 = vector.extract_strided_slice %18 {offsets = [32, 0], sizes = [32, 16], strides = [1, 1]} : vector<64x16xf32> to vector<32x16xf32>
    %cst_19 = arith.constant dense<0.000000e+00> : vector<32x32xf32>
    %21 = tpu.matmul %19, %15, %cst_19 {dimension_numbers = #tpu.dot_dimension_numbers<[1], [0], [0], [1], [0, 0, 1, 1], [], []>} : vector<32x16xf32>, vector<16x32xf32>, vector<32x32xf32> -> vector<32x32xf32>
    %cst_20 = arith.constant dense<0.000000e+00> : vector<32x32xf32>
    %22 = tpu.matmul %20, %16, %cst_20 {dimension_numbers = #tpu.dot_dimension_numbers<[1], [0], [0], [1], [0, 0, 1, 1], [], []>} : vector<32x16xf32>, vector<16x32xf32>, vector<32x32xf32> -> vector<32x32xf32>
    %23 = arith.addf %21, %22 : vector<32x32xf32>
    %24 = arith.addf %23, %13 : vector<32x32xf32>
    %25 = vector.broadcast %17 : vector<1x32xf32> to vector<32x32xf32>
    %26 = arith.addf %24, %25 : vector<32x32xf32>
    %27 = vector.extract_strided_slice %26 {offsets = [0, 0], sizes = [32, 16], strides = [1, 1]} : vector<32x32xf32> to vector<32x16xf32>
    %28 = vector.extract_strided_slice %26 {offsets = [0, 16], sizes = [32, 16], strides = [1, 1]} : vector<32x32xf32> to vector<32x16xf32>
    %cst_21 = arith.constant 0.000000e+00 : f32
    %29 = vector.broadcast %cst_21 : f32 to vector<32x16xf32>
    %30 = arith.subf %29, %27 : vector<32x16xf32>
    %31 = math.exp %30 : vector<32x16xf32>
    %cst_22 = arith.constant 1.000000e+00 : f32
    %32 = vector.broadcast %cst_22 : f32 to vector<32x16xf32>
    %33 = arith.addf %32, %31 : vector<32x16xf32>
    %cst_23 = arith.constant 1.000000e+00 : f32
    %34 = vector.broadcast %cst_23 : f32 to vector<32x16xf32>
    %35 = arith.divf %34, %33 : vector<32x16xf32>
    %cst_24 = arith.constant 0.000000e+00 : f32
    %36 = vector.broadcast %cst_24 : f32 to vector<32x16xf32>
    %37 = arith.maximumf %28, %36 : vector<32x16xf32>
    %38 = math.absf %28 : vector<32x16xf32>
    %cst_25 = arith.constant 0.000000e+00 : f32
    %39 = vector.broadcast %cst_25 : f32 to vector<32x16xf32>
    %40 = arith.subf %39, %38 : vector<32x16xf32>
    %41 = math.exp %40 : vector<32x16xf32>
    %42 = math.log1p %41 : vector<32x16xf32>
    %43 = arith.addf %37, %42 : vector<32x16xf32>
    %44 = arith.mulf %35, %43 : vector<32x16xf32>
    %cst_26 = arith.constant dense<0.000000e+00> : vector<16x16xf32>
    %45 = tpu.matmul %9, %44, %cst_26 {dimension_numbers = #tpu.dot_dimension_numbers<[1], [0], [0], [1], [0, 0, 1, 1], [], []>} : vector<16x32xf32>, vector<32x16xf32>, vector<16x16xf32> -> vector<16x16xf32>
    %46 = arith.addf %5, %45 : vector<16x16xf32>
    %cst_27 = arith.constant 0.000000e+00 : f32
    %47 = vector.broadcast %cst_27 : f32 to vector<16x16xf32>
    %48 = arith.maximumf %46, %47 : vector<16x16xf32>
    %c0_28 = arith.constant 0 : index
    %c0_29 = arith.constant 0 : index
    %49 = vector.load %arg9[%c0_28, %c0_29] : memref<16x64xf32, #tpu.memory_space<vmem>>, vector<16x64xf32>
    %c0_30 = arith.constant 0 : index
    %c0_31 = arith.constant 0 : index
    %50 = vector.load %arg10[%c0_30, %c0_31] : memref<16x64xf32, #tpu.memory_space<vmem>>, vector<16x64xf32>
    %c0_32 = arith.constant 0 : index
    %c0_33 = arith.constant 0 : index
    %51 = vector.load %arg11[%c0_32, %c0_33] : memref<1x64xf32, #tpu.memory_space<vmem>>, vector<1x64xf32>
    %cst_34 = arith.constant dense<0.000000e+00> : vector<64x16xf32>
    %52 = tpu.matmul %7, %48, %cst_34 {dimension_numbers = #tpu.dot_dimension_numbers<[1], [0], [0], [1], [0, 0, 1, 1], [], []>} : vector<64x16xf32>, vector<16x16xf32>, vector<64x16xf32> -> vector<64x16xf32>
    %53 = vector.extract_strided_slice %52 {offsets = [0, 0], sizes = [32, 16], strides = [1, 1]} : vector<64x16xf32> to vector<32x16xf32>
    %54 = vector.extract_strided_slice %52 {offsets = [32, 0], sizes = [32, 16], strides = [1, 1]} : vector<64x16xf32> to vector<32x16xf32>
    %cst_35 = arith.constant dense<0.000000e+00> : vector<32x64xf32>
    %55 = tpu.matmul %53, %49, %cst_35 {dimension_numbers = #tpu.dot_dimension_numbers<[1], [0], [0], [1], [0, 0, 1, 1], [], []>} : vector<32x16xf32>, vector<16x64xf32>, vector<32x64xf32> -> vector<32x64xf32>
    %cst_36 = arith.constant dense<0.000000e+00> : vector<32x64xf32>
    %56 = tpu.matmul %54, %50, %cst_36 {dimension_numbers = #tpu.dot_dimension_numbers<[1], [0], [0], [1], [0, 0, 1, 1], [], []>} : vector<32x16xf32>, vector<16x64xf32>, vector<32x64xf32> -> vector<32x64xf32>
    %57 = arith.addf %55, %56 : vector<32x64xf32>
    %58 = arith.addf %57, %14 : vector<32x64xf32>
    %59 = vector.broadcast %51 : vector<1x64xf32> to vector<32x64xf32>
    %60 = arith.addf %58, %59 : vector<32x64xf32>
    %61 = vector.extract_strided_slice %60 {offsets = [0, 0], sizes = [32, 32], strides = [1, 1]} : vector<32x64xf32> to vector<32x32xf32>
    %62 = vector.extract_strided_slice %60 {offsets = [0, 32], sizes = [32, 32], strides = [1, 1]} : vector<32x64xf32> to vector<32x32xf32>
    %cst_37 = arith.constant 0.000000e+00 : f32
    %63 = vector.broadcast %cst_37 : f32 to vector<32x32xf32>
    %64 = arith.subf %63, %61 : vector<32x32xf32>
    %65 = math.exp %64 : vector<32x32xf32>
    %cst_38 = arith.constant 1.000000e+00 : f32
    %66 = vector.broadcast %cst_38 : f32 to vector<32x32xf32>
    %67 = arith.addf %66, %65 : vector<32x32xf32>
    %cst_39 = arith.constant 1.000000e+00 : f32
    %68 = vector.broadcast %cst_39 : f32 to vector<32x32xf32>
    %69 = arith.divf %68, %67 : vector<32x32xf32>
    %cst_40 = arith.constant 0.000000e+00 : f32
    %70 = vector.broadcast %cst_40 : f32 to vector<32x32xf32>
    %71 = arith.maximumf %62, %70 : vector<32x32xf32>
    %72 = math.absf %62 : vector<32x32xf32>
    %cst_41 = arith.constant 0.000000e+00 : f32
    %73 = vector.broadcast %cst_41 : f32 to vector<32x32xf32>
    %74 = arith.subf %73, %72 : vector<32x32xf32>
    %75 = math.exp %74 : vector<32x32xf32>
    %76 = math.log1p %75 : vector<32x32xf32>
    %77 = arith.addf %71, %76 : vector<32x32xf32>
    %78 = arith.mulf %69, %77 : vector<32x32xf32>
    %cst_42 = arith.constant dense<0.000000e+00> : vector<16x32xf32>
    %79 = tpu.matmul %9, %78, %cst_42 {dimension_numbers = #tpu.dot_dimension_numbers<[1], [0], [0], [1], [0, 0, 1, 1], [], []>} : vector<16x32xf32>, vector<32x32xf32>, vector<16x32xf32> -> vector<16x32xf32>
    %80 = tpu.concatenate %48, %48 in 1 : vector<16x16xf32>, vector<16x16xf32> -> vector<16x32xf32>
    %81 = arith.addf %80, %79 : vector<16x32xf32>
    %c0_43 = arith.constant 0 : index
    %c0_44 = arith.constant 0 : index
    %82 = vector.load %arg12[%c0_43, %c0_44] : memref<16x32xf32, #tpu.memory_space<vmem>>, vector<16x32xf32>
    tpu.vector_store %arg12[%c0_43, %c0_44], %81 {strides = array<i32>} : memref<16x32xf32, #tpu.memory_space<vmem>>, vector<16x32xf32>,
    return
  }
}

</mosaic_0001>

<llo_original>
// kernel: tpu_custom_call.1
$region0: #{tpu_custom_call.1}
  #allocation0 [shape = 'u32[]', space=smem, size = 0x4, offset = 0x4, fixed_abs, tag = 'smem constant byte address 0x4 - core index']
  #allocation1 [shape = 'u32[144,128]{1,0:T(1,128)}', space=vmem, size = 0x12000, scoped, tag = 'internal scratch']
  %s0 = inlined_call_operand.vmem [shape: f32[16,8], index: 0, kind: input, shape index: {}]
  %s1 = inlined_call_operand.vmem [shape: f32[32,4], index: 1, kind: input, shape index: {}]
  %s2 = inlined_call_operand.vmem [shape: bf16[64,16], index: 2, kind: input, shape index: {}]
  %s3 = inlined_call_operand.vmem [shape: f32[8,16], index: 3, kind: input, shape index: {}]
  %s4 = inlined_call_operand.vmem [shape: f32[1,16], index: 4, kind: input, shape index: {}]
  %s5 = inlined_call_operand.vmem [shape: f32[4,96], index: 5, kind: input, shape index: {}]
  %s6 = inlined_call_operand.vmem [shape: f32[16,32], index: 6, kind: input, shape index: {}]
  %s7 = inlined_call_operand.vmem [shape: f32[16,32], index: 7, kind: input, shape index: {}]
  %s8 = inlined_call_operand.vmem [shape: f32[1,32], index: 8, kind: input, shape index: {}]
  %s9 = inlined_call_operand.vmem [shape: f32[16,64], index: 9, kind: input, shape index: {}]
  %s10 = inlined_call_operand.vmem [shape: f32[16,64], index: 10, kind: input, shape index: {}]
  %s11 = inlined_call_operand.vmem [shape: f32[1,64], index: 11, kind: input, shape index: {}]
  %s12 = inlined_call_operand.hbm [shape: f32[16,32], index: 12, kind: output, shape index: {}]
  %s13 = sld [smem:[#allocation0]]
  $region58: #{tpu_custom_call.1} parent=0
    _
  %s15 = ssub.s32 1, %s13
  %s16 = scalar_select 0, %s15, %s13
  $region1: #{tpu_custom_call.1} parent=0
    #allocation2 [shape = 'u8[8192]{0}', space=vmem, size = 0x2000, scoped, tag = 'output window, operand 0, single buffered']
    #allocation3 [shape = 's32[1]{0}', space=sflag, size = 0x4, scoped, tag = 'scoped memory for tpu_custom_call.1']
    %17 = vsyncpa [#allocation3], 0
    // Predicated region
    $region2: #{tpu_custom_call.1} parent=1 // pred_check
      _
    $region3: #{tpu_custom_call.1} parent=1 // pred_check_branch
      %19 = sbr.rel (0) target = $region5
    $region4: #{tpu_custom_call.1} parent=1 // pred_region
      _
    $region5: #{tpu_custom_call.1} parent=1 // pred_fallthru
      _
    // Predicated region
    $region6: #{tpu_custom_call.1} parent=1 // pred_check
      _
    $region7: #{tpu_custom_call.1} parent=1 // pred_check_branch
      %21 = sbr.rel (0) target = $region9
    $region8: #{tpu_custom_call.1} parent=1 // pred_region
      _
    $region9: #{tpu_custom_call.1} parent=1 // pred_fallthru
      _
    // Predicated region
    $region10: #{tpu_custom_call.1} parent=1 // pred_check
      _
    $region11: #{tpu_custom_call.1} parent=1 // pred_check_branch
      %23 = sbr.rel (0) target = $region13
    $region12: #{tpu_custom_call.1} parent=1 // pred_region
      _
    $region13: #{tpu_custom_call.1} parent=1 // pred_fallthru
      _
    // Predicated region
    $region14: #{tpu_custom_call.1} parent=1 // pred_check
      _
    $region15: #{tpu_custom_call.1} parent=1 // pred_check_branch
      %25 = sbr.rel (0) target = $region17
    $region16: #{tpu_custom_call.1} parent=1 // pred_region
      _
    $region17: #{tpu_custom_call.1} parent=1 // pred_fallthru
      _
    // Predicated region
    $region18: #{tpu_custom_call.1} parent=1 // pred_check
      _
    $region19: #{tpu_custom_call.1} parent=1 // pred_check_branch
      %27 = sbr.rel (0) target = $region21
    $region20: #{tpu_custom_call.1} parent=1 // pred_region
      _
    $region21: #{tpu_custom_call.1} parent=1 // pred_fallthru
      _
    // Predicated region
    $region22: #{tpu_custom_call.1} parent=1 // pred_check
      _
    $region23: #{tpu_custom_call.1} parent=1 // pred_check_branch
      %29 = sbr.rel (0) target = $region25
    $region24: #{tpu_custom_call.1} parent=1 // pred_region
      _
    $region25: #{tpu_custom_call.1} parent=1 // pred_fallthru
      _
    // Predicated region
    $region26: #{tpu_custom_call.1} parent=1 // pred_check
      _
    $region27: #{tpu_custom_call.1} parent=1 // pred_check_branch
      %31 = sbr.rel (0) target = $region29
    $region28: #{tpu_custom_call.1} parent=1 // pred_region
      _
    $region29: #{tpu_custom_call.1} parent=1 // pred_fallthru
      _
    // Predicated region
    $region30: #{tpu_custom_call.1} parent=1 // pred_check
      _
    $region31: #{tpu_custom_call.1} parent=1 // pred_check_branch
      %33 = sbr.rel (0) target = $region33
    $region32: #{tpu_custom_call.1} parent=1 // pred_region
      _
    $region33: #{tpu_custom_call.1} parent=1 // pred_fallthru
      _
    // Predicated region
    $region34: #{tpu_custom_call.1} parent=1 // pred_check
      _
    $region35: #{tpu_custom_call.1} parent=1 // pred_check_branch
      %35 = sbr.rel (0) target = $region37
    $region36: #{tpu_custom_call.1} parent=1 // pred_region
      _
    $region37: #{tpu_custom_call.1} parent=1 // pred_fallthru
      _
    // Predicated region
    $region38: #{tpu_custom_call.1} parent=1 // pred_check
      _
    $region39: #{tpu_custom_call.1} parent=1 // pred_check_branch
      %37 = sbr.rel (0) target = $region41
    $region40: #{tpu_custom_call.1} parent=1 // pred_region
      _
    $region41: #{tpu_custom_call.1} parent=1 // pred_fallthru
      _
    // Predicated region
    $region42: #{tpu_custom_call.1} parent=1 // pred_check
      _
    $region43: #{tpu_custom_call.1} parent=1 // pred_check_branch
      %39 = sbr.rel (0) target = $region45
    $region44: #{tpu_custom_call.1} parent=1 // pred_region
      _
    $region45: #{tpu_custom_call.1} parent=1 // pred_fallthru
      _
    // Predicated region
    $region46: #{tpu_custom_call.1} parent=1 // pred_check
      _
    $region47: #{tpu_custom_call.1} parent=1 // pred_check_branch
      %41 = sbr.rel (0) target = $region49
    $region48: #{tpu_custom_call.1} parent=1 // pred_region
      _
    $region49: #{tpu_custom_call.1} parent=1 // pred_fallthru
      _
    %v42 = vld [vmem:[%s0] sm:$0xff]
    %v43 = vld [vmem:[%s0 + $0x8] sm:$0xff]
    %v44 = vld [vmem:[%s3] sm:$0xff]
    %v45 = vld [vmem:[%s4] sm:$0x1]
    %v47 = vlaneseq
    %v48 = vshrl.u32 %v47, 7
    %v49 = vsub.s32 0, %v48
    %v50 = vrot.slane %v45, %v49
    %vm52 = vcmask 64512
    %v54 = vsel %vm52, %v42, 0
    %v57 = vsel %vm52, %v43, 0
    %59 = vmatprep.subr.mxu0 0.0
    %60 = vmatpush1.msra.mxu0 %v44
    %61 = vmatprep.subr.mxu0 0.0
    %62 = vmatpush1.msra.mxu0 0.0
    %63 = vmatprep.subr.mxu0 0.0
    %64 = vmatpush1.msra.mxu0 0.0
    %65 = vmatprep.subr.mxu0 0.0
    %66 = vmatpush1.msra.mxu0 0.0
    %67 = vmatprep.subr.mxu0 0.0
    %68 = vmatpush1.msra.mxu0 0.0
    %69 = vmatprep.subr.mxu0 0.0
    %70 = vmatpush1.msra.mxu0 0.0
    %71 = vmatprep.subr.mxu0 0.0
    %72 = vmatpush1.msra.mxu0 0.0
    %73 = vmatprep.subr.mxu0 0.0
    %74 = vmatpush1.msra.mxu0 0.0
    %75 = vmatprep.subr.mxu0 0.0
    %76 = vmatpush1.msra.mxu0 0.0
    %77 = vmatprep.subr.mxu0 0.0
    %78 = vmatpush1.msra.mxu0 0.0
    %79 = vmatprep.subr.mxu0 0.0
    %80 = vmatpush1.msra.mxu0 0.0
    %81 = vmatprep.subr.mxu0 0.0
    %82 = vmatpush1.msra.mxu0 0.0
    %83 = vmatprep.subr.mxu0 0.0
    %84 = vmatpush1.msra.mxu0 0.0
    %85 = vmatprep.subr.mxu0 0.0
    %86 = vmatpush1.msra.mxu0 0.0
    %87 = vmatprep.subr.mxu0 0.0
    %88 = vmatpush1.msra.mxu0 0.0
    %89 = vmatprep.subr.mxu0 0.0
    %90 = vmatpush1.msra.mxu0 0.0
    %91 = vmatprep.subr.mxu0 0.0
    %92 = vmatpush1.msra.mxu0 0.0
    %93 = vmatprep.subr.mxu0 0.0
    %94 = vmatpush1.msra.mxu0 0.0
    %95 = vmatprep.subr.mxu0 0.0
    %96 = vmatpush1.msra.mxu0 0.0
    %97 = vmatprep.subr.mxu0 0.0
    %98 = vmatpush1.msra.mxu0 0.0
    %99 = vmatprep.subr.mxu0 0.0
    %100 = vmatpush1.msra.mxu0 0.0
    %101 = vmatprep.subr.mxu0 0.0
    %102 = vmatpush1.msra.mxu0 0.0
    %103 = vmatprep.subr.mxu0 0.0
    %104 = vmatpush1.msra.mxu0 0.0
    %105 = vmatprep.subr.mxu0 0.0
    %106 = vmatpush1.msra.mxu0 0.0
    %107 = vmatprep.subr.mxu0 0.0
    %108 = vmatpush1.msra.mxu0 0.0
    %109 = vmatprep.subr.mxu0 0.0
    %110 = vmatpush1.msra.mxu0 0.0
    %111 = vmatprep.subr.mxu0 0.0
    %112 = vmatpush1.msra.mxu0 0.0
    %113 = vmatprep.subr.mxu0 0.0
    %114 = vmatpush1.msra.mxu0 0.0
    %115 = vmatprep.subr.mxu0 0.0
    %116 = vmatpush1.msra.mxu0 0.0
    %117 = vmatprep.subr.mxu0 0.0
    %118 = vmatpush1.msra.mxu0 0.0
    %119 = vmatprep.subr.mxu0 0.0
    %120 = vmatpush1.msra.mxu0 0.0
    %121 = vmatprep.subr.mxu0 0.0
    %122 = vmatpush1.msra.mxu0 0.0
    %123 = vmatprep.mubr.f32.mxu0 0.0
    %124 = vmatmul.mubr.f32.gmra.mrb[0].mxu0 %v54
    %v125 = vpop.f32.mrb[0].mxu0
    %v126 = vadd.f32 %v50, %v125
    %v127 = vpop.f32.mrb[0].mxu0
    %128 = vmatprep.mubr.f32.mxu0 0.0
    %129 = vmatmul.mubr.f32.gmra.mrb[0].mxu0 %v57
    %v130 = vpop.f32.mrb[0].mxu0
    %v131 = vadd.f32 %v50, %v130
    %v132 = vpop.f32.mrb[0].mxu0
    %133 = vdwg.mxu0
    %v134 = vld [vmem:[%s2] sm:$0xf]
    %v135 = vld [vmem:[%s2 + $0x4] sm:$0xf]
    %v136 = vld [vmem:[%s2 + $0x8] sm:$0xf]
    %v137 = vld [vmem:[%s2 + $0xc] sm:$0xf]
    %v138 = vld [vmem:[%s2 + $0x10] sm:$0xf]
    %v139 = vld [vmem:[%s2 + $0x14] sm:$0xf]
    %v140 = vld [vmem:[%s2 + $0x18] sm:$0xf]
    %v141 = vld [vmem:[%s2 + $0x1c] sm:$0xf]
    %v142 = vunpack.c.l.bf16 %v134
    %v143 = vunpack.c.l.bf16 %v135
    %v144 = vunpack.c.l.bf16 %v136
    %v145 = vunpack.c.l.bf16 %v137
    %v146 = vunpack.c.l.bf16 %v138
    %v147 = vunpack.c.l.bf16 %v139
    %v148 = vunpack.c.l.bf16 %v140
    %v149 = vunpack.c.l.bf16 %v141
    %150 = vxpose.xlu0.b32.start [1/16] %v142, 128
    %151 = vxpose.xlu0.b32.cont [2/16] %v143, 128
    %152 = vxpose.xlu0.b32.cont [3/16] %v144, 128
    %153 = vxpose.xlu0.b32.cont [4/16] %v145, 128
    %154 = vxpose.xlu0.b32.cont [5/16] 0.0, 128
    %155 = vxpose.xlu0.b32.cont [6/16] 0.0, 128
    %156 = vxpose.xlu0.b32.cont [7/16] 0.0, 128
    %157 = vxpose.xlu0.b32.cont [8/16] 0.0, 128
    %158 = vxpose.xlu0.b32.cont [9/16] 0.0, 128
    %159 = vxpose.xlu0.b32.cont [10/16] 0.0, 128
    %160 = vxpose.xlu0.b32.cont [11/16] 0.0, 128
    %161 = vxpose.xlu0.b32.cont [12/16] 0.0, 128
    %162 = vxpose.xlu0.b32.cont [13/16] 0.0, 128
    %163 = vxpose.xlu0.b32.cont [14/16] 0.0, 128
    %164 = vxpose.xlu0.b32.cont [15/16] 0.0, 128
    %165 = vxpose.xlu0.b32.end [16/16] 0.0, 128
    %v166 = vpop.trf.xlu0
    %v167 = vpop.trf.xlu0
    %v168 = vpop.trf.xlu0
    %v169 = vpop.trf.xlu0
    %v170 = vpop.trf.xlu0
    %v171 = vpop.trf.xlu0
    %v172 = vpop.trf.xlu0
    %v173 = vpop.trf.xlu0
    %v174 = vpop.trf.xlu0
    %v175 = vpop.trf.xlu0
    %v176 = vpop.trf.xlu0
    %v177 = vpop.trf.xlu0
    %v178 = vpop.trf.xlu0
    %v179 = vpop.trf.xlu0
    %v180 = vpop.trf.xlu0
    %v181 = vpop.trf.xlu0
    %v182 = vld [vmem:[%s1] sm:$0xff]
    %v183 = vld [vmem:[%s1 + $0x8] sm:$0xff]
    %v184 = vld [vmem:[%s1 + $0x10] sm:$0xff]
    %v185 = vld [vmem:[%s1 + $0x18] sm:$0xff]
    %v186 = vld [vmem:[%s5] sm:$0xf]
    %vm187 = vcmask 31744
    %v189 = vsel %vm187, %v182, 0
    %v192 = vsel %vm187, %v183, 0
    %v195 = vsel %vm187, %v184, 0
    %v198 = vsel %vm187, %v185, 0
    %vm200 = vcmask 1043456
    %v202 = vsel %vm200, %v186, 0
    %204 = vmatprep.subr.mxu0 0.0
    %205 = vmatpush1.msra.mxu0 %v202
    %206 = vmatprep.subr.mxu0 0.0
    %207 = vmatpush1.msra.mxu0 0.0
    %208 = vmatprep.subr.mxu0 0.0
    %209 = vmatpush1.msra.mxu0 0.0
    %210 = vmatprep.subr.mxu0 0.0
    %211 = vmatpush1.msra.mxu0 0.0
    %212 = vmatprep.subr.mxu0 0.0
    %213 = vmatpush1.msra.mxu0 0.0
    %214 = vmatprep.subr.mxu0 0.0
    %215 = vmatpush1.msra.mxu0 0.0
    %216 = vmatprep.subr.mxu0 0.0
    %217 = vmatpush1.msra.mxu0 0.0
    %218 = vmatprep.subr.mxu0 0.0
    %219 = vmatpush1.msra.mxu0 0.0
    %220 = vmatprep.subr.mxu0 0.0
    %221 = vmatpush1.msra.mxu0 0.0
    %222 = vmatprep.subr.mxu0 0.0
    %223 = vmatpush1.msra.mxu0 0.0
    %224 = vmatprep.subr.mxu0 0.0
    %225 = vmatpush1.msra.mxu0 0.0
    %226 = vmatprep.subr.mxu0 0.0
    %227 = vmatpush1.msra.mxu0 0.0
    %228 = vmatprep.subr.mxu0 0.0
    %229 = vmatpush1.msra.mxu0 0.0
    %230 = vmatprep.subr.mxu0 0.0
    %231 = vmatpush1.msra.mxu0 0.0
    %232 = vmatprep.subr.mxu0 0.0
    %233 = vmatpush1.msra.mxu0 0.0
    %234 = vmatprep.subr.mxu0 0.0
    %235 = vmatpush1.msra.mxu0 0.0
    %236 = vmatprep.subr.mxu0 0.0
    %237 = vmatpush1.msra.mxu0 0.0
    %238 = vmatprep.subr.mxu0 0.0
    %239 = vmatpush1.msra.mxu0 0.0
    %240 = vmatprep.subr.mxu0 0.0
    %241 = vmatpush1.msra.mxu0 0.0
    %242 = vmatprep.subr.mxu0 0.0
    %243 = vmatpush1.msra.mxu0 0.0
    %244 = vmatprep.subr.mxu0 0.0
    %245 = vmatpush1.msra.mxu0 0.0
    %246 = vmatprep.subr.mxu0 0.0
    %247 = vmatpush1.msra.mxu0 0.0
    %248 = vmatprep.subr.mxu0 0.0
    %249 = vmatpush1.msra.mxu0 0.0
    %250 = vmatprep.subr.mxu0 0.0
    %251 = vmatpush1.msra.mxu0 0.0
    %252 = vmatprep.subr.mxu0 0.0
    %253 = vmatpush1.msra.mxu0 0.0
    %254 = vmatprep.subr.mxu0 0.0
    %255 = vmatpush1.msra.mxu0 0.0
    %256 = vmatprep.subr.mxu0 0.0
    %257 = vmatpush1.msra.mxu0 0.0
    %258 = vmatprep.subr.mxu0 0.0
    %259 = vmatpush1.msra.mxu0 0.0
    %260 = vmatprep.subr.mxu0 0.0
    %261 = vmatpush1.msra.mxu0 0.0
    %262 = vmatprep.subr.mxu0 0.0
    %263 = vmatpush1.msra.mxu0 0.0
    %264 = vmatprep.subr.mxu0 0.0
    %265 = vmatpush1.msra.mxu0 0.0
    %266 = vmatprep.subr.mxu0 0.0
    %267 = vmatpush1.msra.mxu0 0.0
    %268 = vmatprep.mubr.f32.mxu0 0.0
    %269 = vmatmul.mubr.f32.gmra.mrb[0].mxu0 %v189
    %v270 = vpop.f32.mrb[0].mxu0
    %v271 = vadd.f32 0.0, %v270
    %v272 = vpop.f32.mrb[0].mxu0
    %273 = vmatprep.mubr.f32.mxu0 0.0
    %274 = vmatmul.mubr.f32.gmra.mrb[0].mxu0 %v192
    %v275 = vpop.f32.mrb[0].mxu0
    %v276 = vadd.f32 0.0, %v275
    %v277 = vpop.f32.mrb[0].mxu0
    %278 = vmatprep.mubr.f32.mxu0 0.0
    %279 = vmatmul.mubr.f32.gmra.mrb[0].mxu0 %v195
    %v280 = vpop.f32.mrb[0].mxu0
    %v281 = vadd.f32 0.0, %v280
    %v282 = vpop.f32.mrb[0].mxu0
    %283 = vmatprep.mubr.f32.mxu0 0.0
    %284 = vmatmul.mubr.f32.gmra.mrb[0].mxu0 %v198
    %v285 = vpop.f32.mrb[0].mxu0
    %v286 = vadd.f32 0.0, %v285
    %v287 = vpop.f32.mrb[0].mxu0
    %288 = vdwg.mxu0
    %v289 = vld [vmem:[%s6] sm:$0xff]
    %v290 = vld [vmem:[%s6 + $0x8] sm:$0xff]
    %v291 = vld [vmem:[%s7] sm:$0xff]
    %v292 = vld [vmem:[%s7 + $0x8] sm:$0xff]
    %v293 = vld [vmem:[%s8] sm:$0x1]
    %vm294 = vcmask 130048
    %v296 = vsel %vm294, %v142, 0
    %v299 = vsel %vm294, %v143, 0
    %v302 = vsel %vm294, %v144, 0
    %v305 = vsel %vm294, %v145, 0
    %v308 = vsel %vm294, %v146, 0
    %v311 = vsel %vm294, %v147, 0
    %v314 = vsel %vm294, %v148, 0
    %v317 = vsel %vm294, %v149, 0
    %319 = vmatprep.subr.mxu0 0.0
    %320 = vmatpush1.msra.mxu0 %v126
    %321 = vmatprep.subr.mxu0 0.0
    %322 = vmatpush1.msra.mxu0 %v131
    %323 = vmatprep.subr.mxu0 0.0
    %324 = vmatpush1.msra.mxu0 0.0
    %325 = vmatprep.subr.mxu0 0.0
    %326 = vmatpush1.msra.mxu0 0.0
    %327 = vmatprep.subr.mxu0 0.0
    %328 = vmatpush1.msra.mxu0 0.0
    %329 = vmatprep.subr.mxu0 0.0
    %330 = vmatpush1.msra.mxu0 0.0
    %331 = vmatprep.subr.mxu0 0.0
    %332 = vmatpush1.msra.mxu0 0.0
    %333 = vmatprep.subr.mxu0 0.0
    %334 = vmatpush1.msra.mxu0 0.0
    %335 = vmatprep.subr.mxu0 0.0
    %336 = vmatpush1.msra.mxu0 0.0
    %337 = vmatprep.subr.mxu0 0.0
    %338 = vmatpush1.msra.mxu0 0.0
    %339 = vmatprep.subr.mxu0 0.0
    %340 = vmatpush1.msra.mxu0 0.0
    %341 = vmatprep.subr.mxu0 0.0
    %342 = vmatpush1.msra.mxu0 0.0
    %343 = vmatprep.subr.mxu0 0.0
    %344 = vmatpush1.msra.mxu0 0.0
    %345 = vmatprep.subr.mxu0 0.0
    %346 = vmatpush1.msra.mxu0 0.0
    %347 = vmatprep.subr.mxu0 0.0
    %348 = vmatpush1.msra.mxu0 0.0
    %349 = vmatprep.subr.mxu0 0.0
    %350 = vmatpush1.msra.mxu0 0.0
    %351 = vmatprep.subr.mxu0 0.0
    %352 = vmatpush1.msra.mxu0 0.0
    %353 = vmatprep.subr.mxu0 0.0
    %354 = vmatpush1.msra.mxu0 0.0
    %355 = vmatprep.subr.mxu0 0.0
    %356 = vmatpush1.msra.mxu0 0.0
    %357 = vmatprep.subr.mxu0 0.0
    %358 = vmatpush1.msra.mxu0 0.0
    %359 = vmatprep.subr.mxu0 0.0
    %360 = vmatpush1.msra.mxu0 0.0
    %361 = vmatprep.subr.mxu0 0.0
    %362 = vmatpush1.msra.mxu0 0.0
    %363 = vmatprep.subr.mxu0 0.0
    %364 = vmatpush1.msra.mxu0 0.0
    %365 = vmatprep.subr.mxu0 0.0
    %366 = vmatpush1.msra.mxu0 0.0
    %367 = vmatprep.subr.mxu0 0.0
    %368 = vmatpush1.msra.mxu0 0.0
    %369 = vmatprep.subr.mxu0 0.0
    %370 = vmatpush1.msra.mxu0 0.0
    %371 = vmatprep.subr.mxu0 0.0
    %372 = vmatpush1.msra.mxu0 0.0
    %373 = vmatprep.subr.mxu0 0.0
    %374 = vmatpush1.msra.mxu0 0.0
    %375 = vmatprep.subr.mxu0 0.0
    %376 = vmatpush1.msra.mxu0 0.0
    %377 = vmatprep.subr.mxu0 0.0
    %378 = vmatpush1.msra.mxu0 0.0
    %379 = vmatprep.subr.mxu0 0.0
    %380 = vmatpush1.msra.mxu0 0.0
    %381 = vmatprep.subr.mxu0 0.0
    %382 = vmatpush1.msra.mxu0 0.0
    %383 = vmatprep.mubr.f32.mxu0 0.0
    %384 = vmatmul.mubr.f32.gmra.mrb[0].mxu0 %v296
    %v385 = vpop.f32.mrb[0].mxu0
    %v386 = vadd.f32 0.0, %v385
    %v387 = vpop.f32.mrb[0].mxu0
    %388 = vmatprep.mubr.f32.mxu0 0.0
    %389 = vmatmul.mubr.f32.gmra.mrb[0].mxu0 %v299
    %v390 = vpop.f32.mrb[0].mxu0
    %v391 = vadd.f32 0.0, %v390
    %v392 = vpop.f32.mrb[0].mxu0
    %393 = vmatprep.mubr.f32.mxu0 0.0
    %394 = vmatmul.mubr.f32.gmra.mrb[0].mxu0 %v302
    %v395 = vpop.f32.mrb[0].mxu0
    %v396 = vadd.f32 0.0, %v395
    %v397 = vpop.f32.mrb[0].mxu0
    %398 = vmatprep.mubr.f32.mxu0 0.0
    %399 = vmatmul.mubr.f32.gmra.mrb[0].mxu0 %v305
    %v400 = vpop.f32.mrb[0].mxu0
    %v401 = vadd.f32 0.0, %v400
    %v402 = vpop.f32.mrb[0].mxu0
    %403 = vmatprep.mubr.f32.mxu0 0.0
    %404 = vmatmul.mubr.f32.gmra.mrb[0].mxu0 %v308
    %v405 = vpop.f32.mrb[0].mxu0
    %v406 = vadd.f32 0.0, %v405
    %v407 = vpop.f32.mrb[0].mxu0
    %408 = vmatprep.mubr.f32.mxu0 0.0
    %409 = vmatmul.mubr.f32.gmra.mrb[0].mxu0 %v311
    %v410 = vpop.f32.mrb[0].mxu0
    %v411 = vadd.f32 0.0, %v410
    %v412 = vpop.f32.mrb[0].mxu0
    %413 = vmatprep.mubr.f32.mxu0 0.0
    %414 = vmatmul.mubr.f32.gmra.mrb[0].mxu0 %v314
    %v415 = vpop.f32.mrb[0].mxu0
    %v416 = vadd.f32 0.0, %v415
    %v417 = vpop.f32.mrb[0].mxu0
    %418 = vmatprep.mubr.f32.mxu0 0.0
    %419 = vmatmul.mubr.f32.gmra.mrb[0].mxu0 %v317
    %v420 = vpop.f32.mrb[0].mxu0
    %v421 = vadd.f32 0.0, %v420
    %v422 = vpop.f32.mrb[0].mxu0
    %423 = vdwg.mxu0
    %v425 = vsel %vm294, %v406, 0
    %v428 = vsel %vm294, %v411, 0
    %v431 = vsel %vm294, %v416, 0
    %v434 = vsel %vm294, %v421, 0
    %436 = vmatprep.subr.mxu0 0.0
    %437 = vmatpush1.msra.mxu0 %v291
    %438 = vmatprep.subr.mxu0 0.0
    %439 = vmatpush1.msra.mxu0 %v292
    %440 = vmatprep.subr.mxu0 0.0
    %441 = vmatpush1.msra.mxu0 0.0
    %442 = vmatprep.subr.mxu0 0.0
    %443 = vmatpush1.msra.mxu0 0.0
    %444 = vmatprep.subr.mxu0 0.0
    %445 = vmatpush1.msra.mxu0 0.0
    %446 = vmatprep.subr.mxu0 0.0
    %447 = vmatpush1.msra.mxu0 0.0
    %448 = vmatprep.subr.mxu0 0.0
    %449 = vmatpush1.msra.mxu0 0.0
    %450 = vmatprep.subr.mxu0 0.0
    %451 = vmatpush1.msra.mxu0 0.0
    %452 = vmatprep.subr.mxu0 0.0
    %453 = vmatpush1.msra.mxu0 0.0
    %454 = vmatprep.subr.mxu0 0.0
    %455 = vmatpush1.msra.mxu0 0.0
    %456 = vmatprep.subr.mxu0 0.0
    %457 = vmatpush1.msra.mxu0 0.0
    %458 = vmatprep.subr.mxu0 0.0
    %459 = vmatpush1.msra.mxu0 0.0
    %460 = vmatprep.subr.mxu0 0.0
    %461 = vmatpush1.msra.mxu0 0.0
    %462 = vmatprep.subr.mxu0 0.0
    %463 = vmatpush1.msra.mxu0 0.0
    %464 = vmatprep.subr.mxu0 0.0
    %465 = vmatpush1.msra.mxu0 0.0
    %466 = vmatprep.subr.mxu0 0.0
    %467 = vmatpush1.msra.mxu0 0.0
    %468 = vmatprep.subr.mxu0 0.0
    %469 = vmatpush1.msra.mxu0 0.0
    %470 = vmatprep.subr.mxu0 0.0
    %471 = vmatpush1.msra.mxu0 0.0
    %472 = vmatprep.subr.mxu0 0.0
    %473 = vmatpush1.msra.mxu0 0.0
    %474 = vmatprep.subr.mxu0 0.0
    %475 = vmatpush1.msra.mxu0 0.0
    %476 = vmatprep.subr.mxu0 0.0
    %477 = vmatpush1.msra.mxu0 0.0
    %478 = vmatprep.subr.mxu0 0.0
    %479 = vmatpush1.msra.mxu0 0.0
    %480 = vmatprep.subr.mxu0 0.0
    %481 = vmatpush1.msra.mxu0 0.0
    %482 = vmatprep.subr.mxu0 0.0
    %483 = vmatpush1.msra.mxu0 0.0
    %484 = vmatprep.subr.mxu0 0.0
    %485 = vmatpush1.msra.mxu0 0.0
    %486 = vmatprep.subr.mxu0 0.0
    %487 = vmatpush1.msra.mxu0 0.0
    %488 = vmatprep.subr.mxu0 0.0
    %489 = vmatpush1.msra.mxu0 0.0
    %490 = vmatprep.subr.mxu0 0.0
    %491 = vmatpush1.msra.mxu0 0.0
    %492 = vmatprep.subr.mxu0 0.0
    %493 = vmatpush1.msra.mxu0 0.0
    %494 = vmatprep.subr.mxu0 0.0
    %495 = vmatpush1.msra.mxu0 0.0
    %496 = vmatprep.subr.mxu0 0.0
    %497 = vmatpush1.msra.mxu0 0.0
    %498 = vmatprep.subr.mxu0 0.0
    %499 = vmatpush1.msra.mxu0 0.0
    %500 = vmatprep.mubr.f32.mxu0 0.0
    %501 = vmatmul.mubr.f32.gmra.mrb[0].mxu0 %v425
    %v502 = vpop.f32.mrb[0].mxu0
    %v503 = vadd.f32 0.0, %v502
    %v504 = vpop.f32.mrb[0].mxu0
    %505 = vmatprep.mubr.f32.mxu0 0.0
    %506 = vmatmul.mubr.f32.gmra.mrb[0].mxu0 %v428
    %v507 = vpop.f32.mrb[0].mxu0
    %v508 = vadd.f32 0.0, %v507
    %v509 = vpop.f32.mrb[0].mxu0
    %510 = vmatprep.mubr.f32.mxu0 0.0
    %511 = vmatmul.mubr.f32.gmra.mrb[0].mxu0 %v431
    %v512 = vpop.f32.mrb[0].mxu0
    %v513 = vadd.f32 0.0, %v512
    %v514 = vpop.f32.mrb[0].mxu0
    %515 = vmatprep.mubr.f32.mxu0 0.0
    %516 = vmatmul.mubr.f32.gmra.mrb[0].mxu0 %v434
    %v517 = vpop.f32.mrb[0].mxu0
    %v518 = vadd.f32 0.0, %v517
    %v519 = vpop.f32.mrb[0].mxu0
    %520 = vdwg.mxu0
    %v522 = vsel %vm294, %v386, 0
    %v525 = vsel %vm294, %v391, 0
    %v528 = vsel %vm294, %v396, 0
    %v531 = vsel %vm294, %v401, 0
    %533 = vmatprep.subr.mxu0 0.0
    %534 = vmatpush1.msra.mxu0 %v289
    %535 = vmatprep.subr.mxu0 0.0
    %536 = vmatpush1.msra.mxu0 %v290
    %537 = vmatprep.subr.mxu0 0.0
    %538 = vmatpush1.msra.mxu0 0.0
    %539 = vmatprep.subr.mxu0 0.0
    %540 = vmatpush1.msra.mxu0 0.0
    %541 = vmatprep.subr.mxu0 0.0
    %542 = vmatpush1.msra.mxu0 0.0
    %543 = vmatprep.subr.mxu0 0.0
    %544 = vmatpush1.msra.mxu0 0.0
    %545 = vmatprep.subr.mxu0 0.0
    %546 = vmatpush1.msra.mxu0 0.0
    %547 = vmatprep.subr.mxu0 0.0
    %548 = vmatpush1.msra.mxu0 0.0
    %549 = vmatprep.subr.mxu0 0.0
    %550 = vmatpush1.msra.mxu0 0.0
    %551 = vmatprep.subr.mxu0 0.0
    %552 = vmatpush1.msra.mxu0 0.0
    %553 = vmatprep.subr.mxu0 0.0
    %554 = vmatpush1.msra.mxu0 0.0
    %555 = vmatprep.subr.mxu0 0.0
    %556 = vmatpush1.msra.mxu0 0.0
    %557 = vmatprep.subr.mxu0 0.0
    %558 = vmatpush1.msra.mxu0 0.0
    %559 = vmatprep.subr.mxu0 0.0
    %560 = vmatpush1.msra.mxu0 0.0
    %561 = vmatprep.subr.mxu0 0.0
    %562 = vmatpush1.msra.mxu0 0.0
    %563 = vmatprep.subr.mxu0 0.0
    %564 = vmatpush1.msra.mxu0 0.0
    %565 = vmatprep.subr.mxu0 0.0
    %566 = vmatpush1.msra.mxu0 0.0
    %567 = vmatprep.subr.mxu0 0.0
    %568 = vmatpush1.msra.mxu0 0.0
    %569 = vmatprep.subr.mxu0 0.0
    %570 = vmatpush1.msra.mxu0 0.0
    %571 = vmatprep.subr.mxu0 0.0
    %572 = vmatpush1.msra.mxu0 0.0
    %573 = vmatprep.subr.mxu0 0.0
    %574 = vmatpush1.msra.mxu0 0.0
    %575 = vmatprep.subr.mxu0 0.0
    %576 = vmatpush1.msra.mxu0 0.0
    %577 = vmatprep.subr.mxu0 0.0
    %578 = vmatpush1.msra.mxu0 0.0
    %579 = vmatprep.subr.mxu0 0.0
    %580 = vmatpush1.msra.mxu0 0.0
    %581 = vmatprep.subr.mxu0 0.0
    %582 = vmatpush1.msra.mxu0 0.0
    %583 = vmatprep.subr.mxu0 0.0
    %584 = vmatpush1.msra.mxu0 0.0
    %585 = vmatprep.subr.mxu0 0.0
    %586 = vmatpush1.msra.mxu0 0.0
    %587 = vmatprep.subr.mxu0 0.0
    %588 = vmatpush1.msra.mxu0 0.0
    %589 = vmatprep.subr.mxu0 0.0
    %590 = vmatpush1.msra.mxu0 0.0
    %591 = vmatprep.subr.mxu0 0.0
    %592 = vmatpush1.msra.mxu0 0.0
    %593 = vmatprep.subr.mxu0 0.0
    %594 = vmatpush1.msra.mxu0 0.0
    %595 = vmatprep.subr.mxu0 0.0
    %596 = vmatpush1.msra.mxu0 0.0
    %597 = vmatprep.mubr.f32.mxu0 0.0
    %598 = vmatmul.mubr.f32.gmra.mrb[0].mxu0 %v522
    %v599 = vpop.f32.mrb[0].mxu0
    %v600 = vadd.f32 %v503, %v599
    %v601 = vpop.f32.mrb[0].mxu0
    %602 = vmatprep.mubr.f32.mxu0 0.0
    %603 = vmatmul.mubr.f32.gmra.mrb[0].mxu0 %v525
    %v604 = vpop.f32.mrb[0].mxu0
    %v605 = vadd.f32 %v508, %v604
    %v606 = vpop.f32.mrb[0].mxu0
    %607 = vmatprep.mubr.f32.mxu0 0.0
    %608 = vmatmul.mubr.f32.gmra.mrb[0].mxu0 %v528
    %v609 = vpop.f32.mrb[0].mxu0
    %v610 = vadd.f32 %v513, %v609
    %v611 = vpop.f32.mrb[0].mxu0
    %612 = vmatprep.mubr.f32.mxu0 0.0
    %613 = vmatmul.mubr.f32.gmra.mrb[0].mxu0 %v531
    %v614 = vpop.f32.mrb[0].mxu0
    %v615 = vadd.f32 %v518, %v614
    %v616 = vpop.f32.mrb[0].mxu0
    %617 = vdwg.mxu0
    %v618 = vadd.f32 %v600, %v271
    %v619 = vadd.f32 %v605, %v276
    %v620 = vadd.f32 %v610, %v281
    %v621 = vadd.f32 %v615, %v286
    %v623 = vlaneseq
    %v624 = vshrl.u32 %v623, 7
    %v625 = vsub.s32 0, %v624
    %v626 = vrot.slane %v293, %v625
    %v628 = vadd.f32 %v618, %v626
    %v629 = vadd.f32 %v619, %v626
    %v630 = vadd.f32 %v620, %v626
    %v631 = vadd.f32 %v621, %v626
    %v632 = vsub.f32 0.0, %v628
    %v633 = vsub.f32 0.0, %v629
    %v634 = vsub.f32 0.0, %v630
    %v635 = vsub.f32 0.0, %v631
    %v636 = vmul.f32 %v632, 1.442695
    %v637 = vpow.pop %v636
    %v638 = vmul.f32 %v633, 1.442695
    %v639 = vpow.pop %v638
    %v640 = vmul.f32 %v634, 1.442695
    %v641 = vpow.pop %v640
    %v642 = vmul.f32 %v635, 1.442695
    %v643 = vpow.pop %v642
    %v644 = vadd.f32 %v637, 1.0
    %v645 = vadd.f32 %v639, 1.0
    %v646 = vadd.f32 %v641, 1.0
    %v647 = vadd.f32 %v643, 1.0
    %v648 = vrcp.pop %v644
    %v649 = vmul.f32 1.0, %v648
    %v650 = vrcp.pop %v645
    %v651 = vmul.f32 1.0, %v650
    %v652 = vrcp.pop %v646
    %v653 = vmul.f32 1.0, %v652
    %v654 = vrcp.pop %v647
    %v655 = vmul.f32 1.0, %v654
    %v656 = vmax.f32 %v628, 0.0
    %v657 = vmax.f32 %v629, 0.0
    %v658 = vmax.f32 %v630, 0.0
    %v659 = vmax.f32 %v631, 0.0
    %v660 = vand.u32 2147483647, %v628
    %v661 = vand.u32 2147483647, %v629
    %v662 = vand.u32 2147483647, %v630
    %v663 = vand.u32 2147483647, %v631
    %v664 = vsub.f32 0.0, %v660
    %v665 = vsub.f32 0.0, %v661
    %v666 = vsub.f32 0.0, %v662
    %v667 = vsub.f32 0.0, %v663
    %v668 = vmul.f32 %v664, 1.442695
    %v669 = vpow.pop %v668
    %v670 = vmul.f32 %v665, 1.442695
    %v671 = vpow.pop %v670
    %v672 = vmul.f32 %v666, 1.442695
    %v673 = vpow.pop %v672
    %v674 = vmul.f32 %v667, 1.442695
    %v675 = vpow.pop %v674
    %v676 = vadd.f32 %v669, 1.0
    %v677 = vlog2.pop %v676
    %v678 = vmul.f32 %v677, 0.6931472
    %v679 = vmul.f32 -0.5, %v669
    %v680 = vadd.f32 %v679, 1.0
    %v681 = vmul.f32 %v680, %v669
    %v682 = vand.u32 2147483647, %v669
    %vm683 = vcmp.lt.f32.partialorder %v682, 0.0004427343
    %v684 = vsel %vm683, %v681, %v678
    %v685 = vadd.f32 %v671, 1.0
    %v686 = vlog2.pop %v685
    %v687 = vmul.f32 %v686, 0.6931472
    %v688 = vmul.f32 -0.5, %v671
    %v689 = vadd.f32 %v688, 1.0
    %v690 = vmul.f32 %v689, %v671
    %v691 = vand.u32 2147483647, %v671
    %vm692 = vcmp.lt.f32.partialorder %v691, 0.0004427343
    %v693 = vsel %vm692, %v690, %v687
    %v694 = vadd.f32 %v673, 1.0
    %v695 = vlog2.pop %v694
    %v696 = vmul.f32 %v695, 0.6931472
    %v697 = vmul.f32 -0.5, %v673
    %v698 = vadd.f32 %v697, 1.0
    %v699 = vmul.f32 %v698, %v673
    %v700 = vand.u32 2147483647, %v673
    %vm701 = vcmp.lt.f32.partialorder %v700, 0.0004427343
    %v702 = vsel %vm701, %v699, %v696
    %v703 = vadd.f32 %v675, 1.0
    %v704 = vlog2.pop %v703
    %v705 = vmul.f32 %v704, 0.6931472
    %v706 = vmul.f32 -0.5, %v675
    %v707 = vadd.f32 %v706, 1.0
    %v708 = vmul.f32 %v707, %v675
    %v709 = vand.u32 2147483647, %v675
    %vm710 = vcmp.lt.f32.partialorder %v709, 0.0004427343
    %v711 = vsel %vm710, %v708, %v705
    %v712 = vadd.f32 %v656, %v684
    %v713 = vadd.f32 %v657, %v693
    %v714 = vadd.f32 %v658, %v702
    %v715 = vadd.f32 %v659, %v711
    %720 = vrot.lane.b32.xlu0 %v712, 112
    %v721 = vpop.permute.xlu0 %720
    %722 = vrot.lane.b32.xlu0 %v713, 112
    %v723 = vpop.permute.xlu0 %722
    %724 = vrot.lane.b32.xlu0 %v714, 112
    %v725 = vpop.permute.xlu0 %724
    %726 = vrot.lane.b32.xlu0 %v715, 112
    %v727 = vpop.permute.xlu0 %726
    %v732 = vmul.f32 %v649, %v721
    %v733 = vmul.f32 %v651, %v723
    %v734 = vmul.f32 %v653, %v725
    %v735 = vmul.f32 %v655, %v727
    %vm736 = vcmask 261120
    %v738 = vsel %vm736, %v166, 0
    %v741 = vsel %vm736, %v167, 0
    %743 = vmatprep.subr.mxu0 0.0
    %744 = vmatpush1.msra.mxu0 %v732
    %745 = vmatprep.subr.mxu0 0.0
    %746 = vmatpush1.msra.mxu0 %v733
    %747 = vmatprep.subr.mxu0 0.0
    %748 = vmatpush1.msra.mxu0 %v734
    %749 = vmatprep.subr.mxu0 0.0
    %750 = vmatpush1.msra.mxu0 %v735
    %751 = vmatprep.subr.mxu0 0.0
    %752 = vmatpush1.msra.mxu0 0.0
    %753 = vmatprep.subr.mxu0 0.0
    %754 = vmatpush1.msra.mxu0 0.0
    %755 = vmatprep.subr.mxu0 0.0
    %756 = vmatpush1.msra.mxu0 0.0
    %757 = vmatprep.subr.mxu0 0.0
    %758 = vmatpush1.msra.mxu0 0.0
    %759 = vmatprep.subr.mxu0 0.0
    %760 = vmatpush1.msra.mxu0 0.0
    %761 = vmatprep.subr.mxu0 0.0
    %762 = vmatpush1.msra.mxu0 0.0
    %763 = vmatprep.subr.mxu0 0.0
    %764 = vmatpush1.msra.mxu0 0.0
    %765 = vmatprep.subr.mxu0 0.0
    %766 = vmatpush1.msra.mxu0 0.0
    %767 = vmatprep.subr.mxu0 0.0
    %768 = vmatpush1.msra.mxu0 0.0
    %769 = vmatprep.subr.mxu0 0.0
    %770 = vmatpush1.msra.mxu0 0.0
    %771 = vmatprep.subr.mxu0 0.0
    %772 = vmatpush1.msra.mxu0 0.0
    %773 = vmatprep.subr.mxu0 0.0
    %774 = vmatpush1.msra.mxu0 0.0
    %775 = vmatprep.subr.mxu0 0.0
    %776 = vmatpush1.msra.mxu0 0.0
    %777 = vmatprep.subr.mxu0 0.0
    %778 = vmatpush1.msra.mxu0 0.0
    %779 = vmatprep.subr.mxu0 0.0
    %780 = vmatpush1.msra.mxu0 0.0
    %781 = vmatprep.subr.mxu0 0.0
    %782 = vmatpush1.msra.mxu0 0.0
    %783 = vmatprep.subr.mxu0 0.0
    %784 = vmatpush1.msra.mxu0 0.0
    %785 = vmatprep.subr.mxu0 0.0
    %786 = vmatpush1.msra.mxu0 0.0
    %787 = vmatprep.subr.mxu0 0.0
    %788 = vmatpush1.msra.mxu0 0.0
    %789 = vmatprep.subr.mxu0 0.0
    %790 = vmatpush1.msra.mxu0 0.0
    %791 = vmatprep.subr.mxu0 0.0
    %792 = vmatpush1.msra.mxu0 0.0
    %793 = vmatprep.subr.mxu0 0.0
    %794 = vmatpush1.msra.mxu0 0.0
    %795 = vmatprep.subr.mxu0 0.0
    %796 = vmatpush1.msra.mxu0 0.0
    %797 = vmatprep.subr.mxu0 0.0
    %798 = vmatpush1.msra.mxu0 0.0
    %799 = vmatprep.subr.mxu0 0.0
    %800 = vmatpush1.msra.mxu0 0.0
    %801 = vmatprep.subr.mxu0 0.0
    %802 = vmatpush1.msra.mxu0 0.0
    %803 = vmatprep.subr.mxu0 0.0
    %804 = vmatpush1.msra.mxu0 0.0
    %805 = vmatprep.subr.mxu0 0.0
    %806 = vmatpush1.msra.mxu0 0.0
    %807 = vmatprep.mubr.f32.mxu0 0.0
    %808 = vmatmul.mubr.f32.gmra.mrb[0].mxu0 %v738
    %v809 = vpop.f32.mrb[0].mxu0
    %v810 = vadd.f32 0.0, %v809
    %v811 = vpop.f32.mrb[0].mxu0
    %812 = vmatprep.mubr.f32.mxu0 0.0
    %813 = vmatmul.mubr.f32.gmra.mrb[0].mxu0 %v741
    %v814 = vpop.f32.mrb[0].mxu0
    %v815 = vadd.f32 0.0, %v814
    %v816 = vpop.f32.mrb[0].mxu0
    %817 = vdwg.mxu0
    %v818 = vadd.f32 %v126, %v810
    %v819 = vadd.f32 %v131, %v815
    %v820 = vmax.f32 %v818, 0.0
    %v821 = vmax.f32 %v819, 0.0
    %v822 = vld [vmem:[%s9] sm:$0xff]
    %v823 = vld [vmem:[%s9 + $0x8] sm:$0xff]
    %v824 = vld [vmem:[%s10] sm:$0xff]
    %v825 = vld [vmem:[%s10 + $0x8] sm:$0xff]
    %v826 = vld [vmem:[%s11] sm:$0x1]
    %827 = vmatprep.subr.mxu0 0.0
    %828 = vmatpush1.msra.mxu0 %v820
    %829 = vmatprep.subr.mxu0 0.0
    %830 = vmatpush1.msra.mxu0 %v821
    %831 = vmatprep.subr.mxu0 0.0
    %832 = vmatpush1.msra.mxu0 0.0
    %833 = vmatprep.subr.mxu0 0.0
    %834 = vmatpush1.msra.mxu0 0.0
    %835 = vmatprep.subr.mxu0 0.0
    %836 = vmatpush1.msra.mxu0 0.0
    %837 = vmatprep.subr.mxu0 0.0
    %838 = vmatpush1.msra.mxu0 0.0
    %839 = vmatprep.subr.mxu0 0.0
    %840 = vmatpush1.msra.mxu0 0.0
    %841 = vmatprep.subr.mxu0 0.0
    %842 = vmatpush1.msra.mxu0 0.0
    %843 = vmatprep.subr.mxu0 0.0
    %844 = vmatpush1.msra.mxu0 0.0
    %845 = vmatprep.subr.mxu0 0.0
    %846 = vmatpush1.msra.mxu0 0.0
    %847 = vmatprep.subr.mxu0 0.0
    %848 = vmatpush1.msra.mxu0 0.0
    %849 = vmatprep.subr.mxu0 0.0
    %850 = vmatpush1.msra.mxu0 0.0
    %851 = vmatprep.subr.mxu0 0.0
    %852 = vmatpush1.msra.mxu0 0.0
    %853 = vmatprep.subr.mxu0 0.0
    %854 = vmatpush1.msra.mxu0 0.0
    %855 = vmatprep.subr.mxu0 0.0
    %856 = vmatpush1.msra.mxu0 0.0
    %857 = vmatprep.subr.mxu0 0.0
    %858 = vmatpush1.msra.mxu0 0.0
    %859 = vmatprep.subr.mxu0 0.0
    %860 = vmatpush1.msra.mxu0 0.0
    %861 = vmatprep.subr.mxu0 0.0
    %862 = vmatpush1.msra.mxu0 0.0
    %863 = vmatprep.subr.mxu0 0.0
    %864 = vmatpush1.msra.mxu0 0.0
    %865 = vmatprep.subr.mxu0 0.0
    %866 = vmatpush1.msra.mxu0 0.0
    %867 = vmatprep.subr.mxu0 0.0
    %868 = vmatpush1.msra.mxu0 0.0
    %869 = vmatprep.subr.mxu0 0.0
    %870 = vmatpush1.msra.mxu0 0.0
    %871 = vmatprep.subr.mxu0 0.0
    %872 = vmatpush1.msra.mxu0 0.0
    %873 = vmatprep.subr.mxu0 0.0
    %874 = vmatpush1.msra.mxu0 0.0
    %875 = vmatprep.subr.mxu0 0.0
    %876 = vmatpush1.msra.mxu0 0.0
    %877 = vmatprep.subr.mxu0 0.0
    %878 = vmatpush1.msra.mxu0 0.0
    %879 = vmatprep.subr.mxu0 0.0
    %880 = vmatpush1.msra.mxu0 0.0
    %881 = vmatprep.subr.mxu0 0.0
    %882 = vmatpush1.msra.mxu0 0.0
    %883 = vmatprep.subr.mxu0 0.0
    %884 = vmatpush1.msra.mxu0 0.0
    %885 = vmatprep.subr.mxu0 0.0
    %886 = vmatpush1.msra.mxu0 0.0
    %887 = vmatprep.subr.mxu0 0.0
    %888 = vmatpush1.msra.mxu0 0.0
    %889 = vmatprep.subr.mxu0 0.0
    %890 = vmatpush1.msra.mxu0 0.0
    %891 = vmatprep.mubr.f32.mxu0 0.0
    %892 = vmatmul.mubr.f32.gmra.mrb[0].mxu0 %v296
    %v893 = vpop.f32.mrb[0].mxu0
    %v894 = vadd.f32 0.0, %v893
    %v895 = vpop.f32.mrb[0].mxu0
    %896 = vmatprep.mubr.f32.mxu0 0.0
    %897 = vmatmul.mubr.f32.gmra.mrb[0].mxu0 %v299
    %v898 = vpop.f32.mrb[0].mxu0
    %v899 = vadd.f32 0.0, %v898
    %v900 = vpop.f32.mrb[0].mxu0
    %901 = vmatprep.mubr.f32.mxu0 0.0
    %902 = vmatmul.mubr.f32.gmra.mrb[0].mxu0 %v302
    %v903 = vpop.f32.mrb[0].mxu0
    %v904 = vadd.f32 0.0, %v903
    %v905 = vpop.f32.mrb[0].mxu0
    %906 = vmatprep.mubr.f32.mxu0 0.0
    %907 = vmatmul.mubr.f32.gmra.mrb[0].mxu0 %v305
    %v908 = vpop.f32.mrb[0].mxu0
    %v909 = vadd.f32 0.0, %v908
    %v910 = vpop.f32.mrb[0].mxu0
    %911 = vmatprep.mubr.f32.mxu0 0.0
    %912 = vmatmul.mubr.f32.gmra.mrb[0].mxu0 %v308
    %v913 = vpop.f32.mrb[0].mxu0
    %v914 = vadd.f32 0.0, %v913
    %v915 = vpop.f32.mrb[0].mxu0
    %916 = vmatprep.mubr.f32.mxu0 0.0
    %917 = vmatmul.mubr.f32.gmra.mrb[0].mxu0 %v311
    %v918 = vpop.f32.mrb[0].mxu0
    %v919 = vadd.f32 0.0, %v918
    %v920 = vpop.f32.mrb[0].mxu0
    %921 = vmatprep.mubr.f32.mxu0 0.0
    %922 = vmatmul.mubr.f32.gmra.mrb[0].mxu0 %v314
    %v923 = vpop.f32.mrb[0].mxu0
    %v924 = vadd.f32 0.0, %v923
    %v925 = vpop.f32.mrb[0].mxu0
    %926 = vmatprep.mubr.f32.mxu0 0.0
    %927 = vmatmul.mubr.f32.gmra.mrb[0].mxu0 %v317
    %v928 = vpop.f32.mrb[0].mxu0
    %v929 = vadd.f32 0.0, %v928
    %v930 = vpop.f32.mrb[0].mxu0
    %931 = vdwg.mxu0
    %v933 = vsel %vm294, %v914, 0
    %v936 = vsel %vm294, %v919, 0
    %v939 = vsel %vm294, %v924, 0
    %v942 = vsel %vm294, %v929, 0
    %944 = vmatprep.subr.mxu0 0.0
    %945 = vmatpush1.msra.mxu0 %v824
    %946 = vmatprep.subr.mxu0 0.0
    %947 = vmatpush1.msra.mxu0 %v825
    %948 = vmatprep.subr.mxu0 0.0
    %949 = vmatpush1.msra.mxu0 0.0
    %950 = vmatprep.subr.mxu0 0.0
    %951 = vmatpush1.msra.mxu0 0.0
    %952 = vmatprep.subr.mxu0 0.0
    %953 = vmatpush1.msra.mxu0 0.0
    %954 = vmatprep.subr.mxu0 0.0
    %955 = vmatpush1.msra.mxu0 0.0
    %956 = vmatprep.subr.mxu0 0.0
    %957 = vmatpush1.msra.mxu0 0.0
    %958 = vmatprep.subr.mxu0 0.0
    %959 = vmatpush1.msra.mxu0 0.0
    %960 = vmatprep.subr.mxu0 0.0
    %961 = vmatpush1.msra.mxu0 0.0
    %962 = vmatprep.subr.mxu0 0.0
    %963 = vmatpush1.msra.mxu0 0.0
    %964 = vmatprep.subr.mxu0 0.0
    %965 = vmatpush1.msra.mxu0 0.0
    %966 = vmatprep.subr.mxu0 0.0
    %967 = vmatpush1.msra.mxu0 0.0
    %968 = vmatprep.subr.mxu0 0.0
    %969 = vmatpush1.msra.mxu0 0.0
    %970 = vmatprep.subr.mxu0 0.0
    %971 = vmatpush1.msra.mxu0 0.0
    %972 = vmatprep.subr.mxu0 0.0
    %973 = vmatpush1.msra.mxu0 0.0
    %974 = vmatprep.subr.mxu0 0.0
    %975 = vmatpush1.msra.mxu0 0.0
    %976 = vmatprep.subr.mxu0 0.0
    %977 = vmatpush1.msra.mxu0 0.0
    %978 = vmatprep.subr.mxu0 0.0
    %979 = vmatpush1.msra.mxu0 0.0
    %980 = vmatprep.subr.mxu0 0.0
    %981 = vmatpush1.msra.mxu0 0.0
    %982 = vmatprep.subr.mxu0 0.0
    %983 = vmatpush1.msra.mxu0 0.0
    %984 = vmatprep.subr.mxu0 0.0
    %985 = vmatpush1.msra.mxu0 0.0
    %986 = vmatprep.subr.mxu0 0.0
    %987 = vmatpush1.msra.mxu0 0.0
    %988 = vmatprep.subr.mxu0 0.0
    %989 = vmatpush1.msra.mxu0 0.0
    %990 = vmatprep.subr.mxu0 0.0
    %991 = vmatpush1.msra.mxu0 0.0
    %992 = vmatprep.subr.mxu0 0.0
    %993 = vmatpush1.msra.mxu0 0.0
    %994 = vmatprep.subr.mxu0 0.0
    %995 = vmatpush1.msra.mxu0 0.0
    %996 = vmatprep.subr.mxu0 0.0
    %997 = vmatpush1.msra.mxu0 0.0
    %998 = vmatprep.subr.mxu0 0.0
    %999 = vmatpush1.msra.mxu0 0.0
    %1000 = vmatprep.subr.mxu0 0.0
    %1001 = vmatpush1.msra.mxu0 0.0
    %1002 = vmatprep.subr.mxu0 0.0
    %1003 = vmatpush1.msra.mxu0 0.0
    %1004 = vmatprep.subr.mxu0 0.0
    %1005 = vmatpush1.msra.mxu0 0.0
    %1006 = vmatprep.subr.mxu0 0.0
    %1007 = vmatpush1.msra.mxu0 0.0
    %1008 = vmatprep.mubr.f32.mxu0 0.0
    %1009 = vmatmul.mubr.f32.gmra.mrb[0].mxu0 %v933
    %v1010 = vpop.f32.mrb[0].mxu0
    %v1011 = vadd.f32 0.0, %v1010
    %v1012 = vpop.f32.mrb[0].mxu0
    %1013 = vmatprep.mubr.f32.mxu0 0.0
    %1014 = vmatmul.mubr.f32.gmra.mrb[0].mxu0 %v936
    %v1015 = vpop.f32.mrb[0].mxu0
    %v1016 = vadd.f32 0.0, %v1015
    %v1017 = vpop.f32.mrb[0].mxu0
    %1018 = vmatprep.mubr.f32.mxu0 0.0
    %1019 = vmatmul.mubr.f32.gmra.mrb[0].mxu0 %v939
    %v1020 = vpop.f32.mrb[0].mxu0
    %v1021 = vadd.f32 0.0, %v1020
    %v1022 = vpop.f32.mrb[0].mxu0
    %1023 = vmatprep.mubr.f32.mxu0 0.0
    %1024 = vmatmul.mubr.f32.gmra.mrb[0].mxu0 %v942
    %v1025 = vpop.f32.mrb[0].mxu0
    %v1026 = vadd.f32 0.0, %v1025
    %v1027 = vpop.f32.mrb[0].mxu0
    %1028 = vdwg.mxu0
    %v1030 = vsel %vm294, %v894, 0
    %v1033 = vsel %vm294, %v899, 0
    %v1036 = vsel %vm294, %v904, 0
    %v1039 = vsel %vm294, %v909, 0
    %1041 = vmatprep.subr.mxu0 0.0
    %1042 = vmatpush1.msra.mxu0 %v822
    %1043 = vmatprep.subr.mxu0 0.0
    %1044 = vmatpush1.msra.mxu0 %v823
    %1045 = vmatprep.subr.mxu0 0.0
    %1046 = vmatpush1.msra.mxu0 0.0
    %1047 = vmatprep.subr.mxu0 0.0
    %1048 = vmatpush1.msra.mxu0 0.0
    %1049 = vmatprep.subr.mxu0 0.0
    %1050 = vmatpush1.msra.mxu0 0.0
    %1051 = vmatprep.subr.mxu0 0.0
    %1052 = vmatpush1.msra.mxu0 0.0
    %1053 = vmatprep.subr.mxu0 0.0
    %1054 = vmatpush1.msra.mxu0 0.0
    %1055 = vmatprep.subr.mxu0 0.0
    %1056 = vmatpush1.msra.mxu0 0.0
    %1057 = vmatprep.subr.mxu0 0.0
    %1058 = vmatpush1.msra.mxu0 0.0
    %1059 = vmatprep.subr.mxu0 0.0
    %1060 = vmatpush1.msra.mxu0 0.0
    %1061 = vmatprep.subr.mxu0 0.0
    %1062 = vmatpush1.msra.mxu0 0.0
    %1063 = vmatprep.subr.mxu0 0.0
    %1064 = vmatpush1.msra.mxu0 0.0
    %1065 = vmatprep.subr.mxu0 0.0
    %1066 = vmatpush1.msra.mxu0 0.0
    %1067 = vmatprep.subr.mxu0 0.0
    %1068 = vmatpush1.msra.mxu0 0.0
    %1069 = vmatprep.subr.mxu0 0.0
    %1070 = vmatpush1.msra.mxu0 0.0
    %1071 = vmatprep.subr.mxu0 0.0
    %1072 = vmatpush1.msra.mxu0 0.0
    %1073 = vmatprep.subr.mxu0 0.0
    %1074 = vmatpush1.msra.mxu0 0.0
    %1075 = vmatprep.subr.mxu0 0.0
    %1076 = vmatpush1.msra.mxu0 0.0
    %1077 = vmatprep.subr.mxu0 0.0
    %1078 = vmatpush1.msra.mxu0 0.0
    %1079 = vmatprep.subr.mxu0 0.0
    %1080 = vmatpush1.msra.mxu0 0.0
    %1081 = vmatprep.subr.mxu0 0.0
    %1082 = vmatpush1.msra.mxu0 0.0
    %1083 = vmatprep.subr.mxu0 0.0
    %1084 = vmatpush1.msra.mxu0 0.0
    %1085 = vmatprep.subr.mxu0 0.0
    %1086 = vmatpush1.msra.mxu0 0.0
    %1087 = vmatprep.subr.mxu0 0.0
    %1088 = vmatpush1.msra.mxu0 0.0
    %1089 = vmatprep.subr.mxu0 0.0
    %1090 = vmatpush1.msra.mxu0 0.0
    %1091 = vmatprep.subr.mxu0 0.0
    %1092 = vmatpush1.msra.mxu0 0.0
    %1093 = vmatprep.subr.mxu0 0.0
    %1094 = vmatpush1.msra.mxu0 0.0
    %1095 = vmatprep.subr.mxu0 0.0
    %1096 = vmatpush1.msra.mxu0 0.0
    %1097 = vmatprep.subr.mxu0 0.0
    %1098 = vmatpush1.msra.mxu0 0.0
    %1099 = vmatprep.subr.mxu0 0.0
    %1100 = vmatpush1.msra.mxu0 0.0
    %1101 = vmatprep.subr.mxu0 0.0
    %1102 = vmatpush1.msra.mxu0 0.0
    %1103 = vmatprep.subr.mxu0 0.0
    %1104 = vmatpush1.msra.mxu0 0.0
    %1105 = vmatprep.mubr.f32.mxu0 0.0
    %1106 = vmatmul.mubr.f32.gmra.mrb[0].mxu0 %v1030
    %v1107 = vpop.f32.mrb[0].mxu0
    %v1108 = vadd.f32 %v1011, %v1107
    %v1109 = vpop.f32.mrb[0].mxu0
    %1110 = vmatprep.mubr.f32.mxu0 0.0
    %1111 = vmatmul.mubr.f32.gmra.mrb[0].mxu0 %v1033
    %v1112 = vpop.f32.mrb[0].mxu0
    %v1113 = vadd.f32 %v1016, %v1112
    %v1114 = vpop.f32.mrb[0].mxu0
    %1115 = vmatprep.mubr.f32.mxu0 0.0
    %1116 = vmatmul.mubr.f32.gmra.mrb[0].mxu0 %v1036
    %v1117 = vpop.f32.mrb[0].mxu0
    %v1118 = vadd.f32 %v1021, %v1117
    %v1119 = vpop.f32.mrb[0].mxu0
    %1120 = vmatprep.mubr.f32.mxu0 0.0
    %1121 = vmatmul.mubr.f32.gmra.mrb[0].mxu0 %v1039
    %v1122 = vpop.f32.mrb[0].mxu0
    %v1123 = vadd.f32 %v1026, %v1122
    %v1124 = vpop.f32.mrb[0].mxu0
    %1125 = vdwg.mxu0
    %1130 = vrot.lane.b32.xlu0 %v271, 96
    %v1131 = vpop.permute.xlu0 %1130
    %1132 = vrot.lane.b32.xlu0 %v276, 96
    %v1133 = vpop.permute.xlu0 %1132
    %1134 = vrot.lane.b32.xlu0 %v281, 96
    %v1135 = vpop.permute.xlu0 %1134
    %1136 = vrot.lane.b32.xlu0 %v286, 96
    %v1137 = vpop.permute.xlu0 %1136
    %v1142 = vadd.f32 %v1108, %v1131
    %v1143 = vadd.f32 %v1113, %v1133
    %v1144 = vadd.f32 %v1118, %v1135
    %v1145 = vadd.f32 %v1123, %v1137
    %v1147 = vlaneseq
    %v1148 = vshrl.u32 %v1147, 7
    %v1149 = vsub.s32 0, %v1148
    %v1150 = vrot.slane %v826, %v1149
    %v1152 = vadd.f32 %v1142, %v1150
    %v1153 = vadd.f32 %v1143, %v1150
    %v1154 = vadd.f32 %v1144, %v1150
    %v1155 = vadd.f32 %v1145, %v1150
    %v1156 = vsub.f32 0.0, %v1152
    %v1157 = vsub.f32 0.0, %v1153
    %v1158 = vsub.f32 0.0, %v1154
    %v1159 = vsub.f32 0.0, %v1155
    %v1160 = vmul.f32 %v1156, 1.442695
    %v1161 = vpow.pop %v1160
    %v1162 = vmul.f32 %v1157, 1.442695
    %v1163 = vpow.pop %v1162
    %v1164 = vmul.f32 %v1158, 1.442695
    %v1165 = vpow.pop %v1164
    %v1166 = vmul.f32 %v1159, 1.442695
    %v1167 = vpow.pop %v1166
    %v1168 = vadd.f32 %v1161, 1.0
    %v1169 = vadd.f32 %v1163, 1.0
    %v1170 = vadd.f32 %v1165, 1.0
    %v1171 = vadd.f32 %v1167, 1.0
    %v1172 = vrcp.pop %v1168
    %v1173 = vmul.f32 1.0, %v1172
    %v1174 = vrcp.pop %v1169
    %v1175 = vmul.f32 1.0, %v1174
    %v1176 = vrcp.pop %v1170
    %v1177 = vmul.f32 1.0, %v1176
    %v1178 = vrcp.pop %v1171
    %v1179 = vmul.f32 1.0, %v1178
    %v1180 = vmax.f32 %v1152, 0.0
    %v1181 = vmax.f32 %v1153, 0.0
    %v1182 = vmax.f32 %v1154, 0.0
    %v1183 = vmax.f32 %v1155, 0.0
    %v1184 = vand.u32 2147483647, %v1152
    %v1185 = vand.u32 2147483647, %v1153
    %v1186 = vand.u32 2147483647, %v1154
    %v1187 = vand.u32 2147483647, %v1155
    %v1188 = vsub.f32 0.0, %v1184
    %v1189 = vsub.f32 0.0, %v1185
    %v1190 = vsub.f32 0.0, %v1186
    %v1191 = vsub.f32 0.0, %v1187
    %v1192 = vmul.f32 %v1188, 1.442695
    %v1193 = vpow.pop %v1192
    %v1194 = vmul.f32 %v1189, 1.442695
    %v1195 = vpow.pop %v1194
    %v1196 = vmul.f32 %v1190, 1.442695
    %v1197 = vpow.pop %v1196
    %v1198 = vmul.f32 %v1191, 1.442695
    %v1199 = vpow.pop %v1198
    %v1200 = vadd.f32 %v1193, 1.0
    %v1201 = vlog2.pop %v1200
    %v1202 = vmul.f32 %v1201, 0.6931472
    %v1203 = vmul.f32 -0.5, %v1193
    %v1204 = vadd.f32 %v1203, 1.0
    %v1205 = vmul.f32 %v1204, %v1193
    %v1206 = vand.u32 2147483647, %v1193
    %vm1207 = vcmp.lt.f32.partialorder %v1206, 0.0004427343
    %v1208 = vsel %vm1207, %v1205, %v1202
    %v1209 = vadd.f32 %v1195, 1.0
    %v1210 = vlog2.pop %v1209
    %v1211 = vmul.f32 %v1210, 0.6931472
    %v1212 = vmul.f32 -0.5, %v1195
    %v1213 = vadd.f32 %v1212, 1.0
    %v1214 = vmul.f32 %v1213, %v1195
    %v1215 = vand.u32 2147483647, %v1195
    %vm1216 = vcmp.lt.f32.partialorder %v1215, 0.0004427343
    %v1217 = vsel %vm1216, %v1214, %v1211
    %v1218 = vadd.f32 %v1197, 1.0
    %v1219 = vlog2.pop %v1218
    %v1220 = vmul.f32 %v1219, 0.6931472
    %v1221 = vmul.f32 -0.5, %v1197
    %v1222 = vadd.f32 %v1221, 1.0
    %v1223 = vmul.f32 %v1222, %v1197
    %v1224 = vand.u32 2147483647, %v1197
    %vm1225 = vcmp.lt.f32.partialorder %v1224, 0.0004427343
    %v1226 = vsel %vm1225, %v1223, %v1220
    %v1227 = vadd.f32 %v1199, 1.0
    %v1228 = vlog2.pop %v1227
    %v1229 = vmul.f32 %v1228, 0.6931472
    %v1230 = vmul.f32 -0.5, %v1199
    %v1231 = vadd.f32 %v1230, 1.0
    %v1232 = vmul.f32 %v1231, %v1199
    %v1233 = vand.u32 2147483647, %v1199
    %vm1234 = vcmp.lt.f32.partialorder %v1233, 0.0004427343
    %v1235 = vsel %vm1234, %v1232, %v1229
    %v1236 = vadd.f32 %v1180, %v1208
    %v1237 = vadd.f32 %v1181, %v1217
    %v1238 = vadd.f32 %v1182, %v1226
    %v1239 = vadd.f32 %v1183, %v1235
    %1244 = vrot.lane.b32.xlu0 %v1236, 96
    %v1245 = vpop.permute.xlu0 %1244
    %1246 = vrot.lane.b32.xlu0 %v1237, 96
    %v1247 = vpop.permute.xlu0 %1246
    %1248 = vrot.lane.b32.xlu0 %v1238, 96
    %v1249 = vpop.permute.xlu0 %1248
    %1250 = vrot.lane.b32.xlu0 %v1239, 96
    %v1251 = vpop.permute.xlu0 %1250
    %v1256 = vmul.f32 %v1173, %v1245
    %v1257 = vmul.f32 %v1175, %v1247
    %v1258 = vmul.f32 %v1177, %v1249
    %v1259 = vmul.f32 %v1179, %v1251
    %1260 = vmatprep.subr.mxu0 0.0
    %1261 = vmatpush1.msra.mxu0 %v1256
    %1262 = vmatprep.subr.mxu0 0.0
    %1263 = vmatpush1.msra.mxu0 %v1257
    %1264 = vmatprep.subr.mxu0 0.0
    %1265 = vmatpush1.msra.mxu0 %v1258
    %1266 = vmatprep.subr.mxu0 0.0
    %1267 = vmatpush1.msra.mxu0 %v1259
    %1268 = vmatprep.subr.mxu0 0.0
    %1269 = vmatpush1.msra.mxu0 0.0
    %1270 = vmatprep.subr.mxu0 0.0
    %1271 = vmatpush1.msra.mxu0 0.0
    %1272 = vmatprep.subr.mxu0 0.0
    %1273 = vmatpush1.msra.mxu0 0.0
    %1274 = vmatprep.subr.mxu0 0.0
    %1275 = vmatpush1.msra.mxu0 0.0
    %1276 = vmatprep.subr.mxu0 0.0
    %1277 = vmatpush1.msra.mxu0 0.0
    %1278 = vmatprep.subr.mxu0 0.0
    %1279 = vmatpush1.msra.mxu0 0.0
    %1280 = vmatprep.subr.mxu0 0.0
    %1281 = vmatpush1.msra.mxu0 0.0
    %1282 = vmatprep.subr.mxu0 0.0
    %1283 = vmatpush1.msra.mxu0 0.0
    %1284 = vmatprep.subr.mxu0 0.0
    %1285 = vmatpush1.msra.mxu0 0.0
    %1286 = vmatprep.subr.mxu0 0.0
    %1287 = vmatpush1.msra.mxu0 0.0
    %1288 = vmatprep.subr.mxu0 0.0
    %1289 = vmatpush1.msra.mxu0 0.0
    %1290 = vmatprep.subr.mxu0 0.0
    %1291 = vmatpush1.msra.mxu0 0.0
    %1292 = vmatprep.subr.mxu0 0.0
    %1293 = vmatpush1.msra.mxu0 0.0
    %1294 = vmatprep.subr.mxu0 0.0
    %1295 = vmatpush1.msra.mxu0 0.0
    %1296 = vmatprep.subr.mxu0 0.0
    %1297 = vmatpush1.msra.mxu0 0.0
    %1298 = vmatprep.subr.mxu0 0.0
    %1299 = vmatpush1.msra.mxu0 0.0
    %1300 = vmatprep.subr.mxu0 0.0
    %1301 = vmatpush1.msra.mxu0 0.0
    %1302 = vmatprep.subr.mxu0 0.0
    %1303 = vmatpush1.msra.mxu0 0.0
    %1304 = vmatprep.subr.mxu0 0.0
    %1305 = vmatpush1.msra.mxu0 0.0
    %1306 = vmatprep.subr.mxu0 0.0
    %1307 = vmatpush1.msra.mxu0 0.0
    %1308 = vmatprep.subr.mxu0 0.0
    %1309 = vmatpush1.msra.mxu0 0.0
    %1310 = vmatprep.subr.mxu0 0.0
    %1311 = vmatpush1.msra.mxu0 0.0
    %1312 = vmatprep.subr.mxu0 0.0
    %1313 = vmatpush1.msra.mxu0 0.0
    %1314 = vmatprep.subr.mxu0 0.0
    %1315 = vmatpush1.msra.mxu0 0.0
    %1316 = vmatprep.subr.mxu0 0.0
    %1317 = vmatpush1.msra.mxu0 0.0
    %1318 = vmatprep.subr.mxu0 0.0
    %1319 = vmatpush1.msra.mxu0 0.0
    %1320 = vmatprep.subr.mxu0 0.0
    %1321 = vmatpush1.msra.mxu0 0.0
    %1322 = vmatprep.subr.mxu0 0.0
    %1323 = vmatpush1.msra.mxu0 0.0
    %1324 = vmatprep.mubr.f32.mxu0 0.0
    %1325 = vmatmul.mubr.f32.gmra.mrb[0].mxu0 %v738
    %v1326 = vpop.f32.mrb[0].mxu0
    %v1327 = vadd.f32 0.0, %v1326
    %v1328 = vpop.f32.mrb[0].mxu0
    %1329 = vmatprep.mubr.f32.mxu0 0.0
    %1330 = vmatmul.mubr.f32.gmra.mrb[0].mxu0 %v741
    %v1331 = vpop.f32.mrb[0].mxu0
    %v1332 = vadd.f32 0.0, %v1331
    %v1333 = vpop.f32.mrb[0].mxu0
    %1334 = vdwg.mxu0
    %1337 = vrot.lane.b32.xlu0 %v820, 16
    %v1338 = vpop.permute.xlu0 %1337
    %1339 = vrot.lane.b32.xlu0 %v821, 16
    %v1340 = vpop.permute.xlu0 %1339
    %v1343 = vsel %vm294, %v820, %v1338
    %v1344 = vsel %vm294, %v821, %v1340
    %v1345 = vadd.f32 %v1343, %v1327
    %v1346 = vadd.f32 %v1344, %v1332
    %1347 = vst.msk [vmem:[#allocation2] sm:$0xff] %vm736, %v1345
    %1348 = vst.msk [vmem:[#allocation2 + $0x8] sm:$0xff] %vm736, %v1346
    // Predicated region
    $region50: #{tpu_custom_call.1} parent=1 // pred_check
      _
    $region51: #{tpu_custom_call.1} parent=1 // pred_check_branch
      %1350 = sbr.rel (0) target = $region53
    $region52: #{tpu_custom_call.1} parent=1 // pred_region
      %s1352 = ssub.s32 256, 256
      %1353 = vsyncadd [#allocation3], %s1352
      %s1354 = sshll.u32 [#allocation2], 4
      %s1355 = int_to_ptr.vmem [resolvable:$true] %s1354
      %1360 = dma.vmem_to_hbm [thread:$0]  %s1355, 256, %s12, [#allocation3], 128, 128, 8
    $region53: #{tpu_custom_call.1} parent=1 // pred_fallthru
      _
    // Predicated region
    $region54: #{tpu_custom_call.1} parent=1 // pred_check
      _
    $region55: #{tpu_custom_call.1} parent=1 // pred_check_branch
      %1362 = sbr.rel (0) target = $region57
    $region56: #{tpu_custom_call.1} parent=1 // pred_region
      %1363 = dma.done [#allocation3], 256
    $region57: #{tpu_custom_call.1} parent=1 // pred_fallthru
      _
    %1364 = vsyncpa [#allocation3], 1

</llo_original>
